<compile_context>
chip_gen: v7x
topology: tpu7x:2x2x1
jax: 0.10.0
libtpu: 0.0.40
codegen_flags: <defaults>
</compile_context>

<pallas_src>
import functools
import math

import jax
import jax.numpy as jnp
from jax.experimental import pallas as pl
from jax.experimental.pallas import tpu as pltpu

BN_EPS = 1e-5
LANE = 128
SUBLANE = 8


def _round_up(x, k):
    return ((x + k - 1) // k) * k


# --------------------------------------------------------------------------- #
# Kernels
# --------------------------------------------------------------------------- #
def _conv_stats_kernel(a_ref, w_ref, sum_ref, sq_ref):
    """Per-channel sum / sum-of-squares of the conv output, accumulated over the
    inner ("arbitrary") M-tile axis into resident output blocks."""
    @pl.when(pl.program_id(1) == 0)
    def _init():
        sum_ref[...] = jnp.zeros_like(sum_ref)
        sq_ref[...] = jnp.zeros_like(sq_ref)

    conv = jnp.dot(a_ref[...], w_ref[...], preferred_element_type=jnp.float32)
    sum_ref[...] += jnp.sum(conv, axis=0, keepdims=True)[None]          # (1,1,Cp)
    sq_ref[...] += jnp.sum(conv * conv, axis=0, keepdims=True)[None]    # (1,1,Cp)


def _conv_bn_relu_kernel(a_ref, w_ref, scale_ref, shift_ref, o_ref):
    """conv -> y = max(conv*scale + shift, 0); scale/shift fold BN mean/var/gamma/beta."""
    conv = jnp.dot(a_ref[...], w_ref[...], preferred_element_type=jnp.float32)
    o_ref[...] = jnp.maximum(conv * scale_ref[...] + shift_ref[...], 0.0)


# --------------------------------------------------------------------------- #
# im2col (NHWC column order: ky, kx, c) — plain-JAX glue, no extra transpose.
# --------------------------------------------------------------------------- #
def _im2col_nhwc(x_nhwc, k, stride, padding):
    n, h, w, c = x_nhwc.shape
    h_out = (h + 2 * padding - k) // stride + 1
    w_out = (w + 2 * padding - k) // stride + 1
    xp = jnp.pad(x_nhwc, ((0, 0), (padding, padding), (padding, padding), (0, 0)))
    cols = []
    for ky in range(k):
        for kx in range(k):
            cols.append(
                xp[:, ky:ky + (h_out - 1) * stride + 1:stride,
                      kx:kx + (w_out - 1) * stride + 1:stride, :]
            )  # (N, H_out, W_out, C)
    a = jnp.stack(cols, axis=3)                    # (N, H_out, W_out, K*K, C)
    a = a.reshape(n * h_out * w_out, k * k * c)    # (M, K*K*C) — contiguous
    return a, h_out, w_out


# --------------------------------------------------------------------------- #
# Forward
# --------------------------------------------------------------------------- #
@functools.partial(
    jax.jit,
    static_argnames=("kernel_size", "stride", "padding", "tile_m", "matmul_dtype"),
)
def conv_block_forward(x, weight, bias, gamma, beta, *,
                       kernel_size, stride, padding,
                       tile_m=256, matmul_dtype=jnp.float32):
    """ConvBlock forward. x: (N, C_in, H, W) f32; weight: (C_out, C_in, K, K).

    Returns NCHW to match the PyTorch module. `bias` is accepted for signature
    compatibility but unused: it cancels exactly under training-mode BatchNorm.
    """
    del bias  # cancels under BN(training); see module docstring.

    n, c_in, h, w = x.shape
    c_out = weight.shape[0]
    k = kernel_size

    # One NCHW -> NHWC layout change at the module boundary.
    # TODO(synk): keep activations NHWC across the whole model to drop this too.
    x_nhwc = jnp.transpose(x, (0, 2, 3, 1))
    a, h_out, w_out = _im2col_nhwc(x_nhwc, k, stride, padding)         # (M, CK)
    m, ck = a.shape

    # Weight in (ky, kx, c_in) column order to match the NHWC patches.
    w_mat = weight.transpose(0, 2, 3, 1).reshape(c_out, ck).T          # (CK, C_out)

    # Padded, aligned shapes: lane-dense C_out, sublane-aligned CK, tiled M.
    cp = _round_up(c_out, LANE)
    ckp = _round_up(ck, SUBLANE)
    tm = min(tile_m, _round_up(m, SUBLANE))
    num_m = -(-m // tm)
    n_outer = 2 if num_m >= 2 else 1          # megacore-friendly parallel axis
    n_inner = -(-num_m // n_outer)
    m_pad = tm * n_outer * n_inner

    a_p = jnp.pad(a, ((0, m_pad - m), (0, ckp - ck))).astype(matmul_dtype)
    w_p = jnp.pad(w_mat, ((0, ckp - ck), (0, cp - c_out))).astype(matmul_dtype)
    gamma_p = jnp.pad(gamma, (0, cp - c_out)).reshape(1, cp).astype(jnp.float32)
    beta_p = jnp.pad(beta, (0, cp - c_out)).reshape(1, cp).astype(jnp.float32)

    cparams = pltpu.CompilerParams(vmem_limit_bytes=48 << 20)

    # ---- Pass 1: per-channel sum / sum-of-squares of conv output ------------ #
    sum_parts, sq_parts = pl.pallas_call(
        _conv_stats_kernel,
        out_shape=(
            jax.ShapeDtypeStruct((n_outer, 1, cp), jnp.float32),
            jax.ShapeDtypeStruct((n_outer, 1, cp), jnp.float32),
        ),
        grid=(n_outer, n_inner),
        in_specs=[
            pl.BlockSpec((tm, ckp), lambda o, i: (o * n_inner + i, 0)),
            pl.BlockSpec((ckp, cp), lambda o, i: (0, 0)),
        ],
        out_specs=(
            pl.BlockSpec((1, 1, cp), lambda o, i: (o, 0, 0)),
            pl.BlockSpec((1, 1, cp), lambda o, i: (o, 0, 0)),
        ),
        compiler_params=pltpu.CompilerParams(
            dimension_semantics=("parallel", "arbitrary"),
            vmem_limit_bytes=48 << 20,
        ),
    )(a_p, w_p)

    # Combine partials (tiny) and fold BN params into scale/shift.
    # Padded rows of A are zero and bias is dropped, so they contribute 0 to the
    # sums; divide by the true M.  f32 accumulators; E[x^2]-E[x]^2 is fine here.
    total_sum = jnp.sum(sum_parts, axis=0)          # (1, Cp)
    total_sq = jnp.sum(sq_parts, axis=0)            # (1, Cp)
    mean = total_sum / m
    var = jnp.maximum(total_sq / m - mean * mean, 0.0)   # biased var (PyTorch train)
    inv_std = jax.lax.rsqrt(var + BN_EPS)
    scale = gamma_p * inv_std                        # (1, Cp)
    shift = beta_p - mean * scale                    # (1, Cp)

    # ---- Pass 2: conv -> affine BN -> ReLU, lane-dense output --------------- #
    out_flat = pl.pallas_call(
        _conv_bn_relu_kernel,
        out_shape=jax.ShapeDtypeStruct((m_pad, cp), jnp.float32),
        grid=(n_outer * n_inner,),
        in_specs=[
            pl.BlockSpec((tm, ckp), lambda i: (i, 0)),
            pl.BlockSpec((ckp, cp), lambda i: (0, 0)),
            pl.BlockSpec((1, cp), lambda i: (0, 0)),
            pl.BlockSpec((1, cp), lambda i: (0, 0)),
        ],
        out_specs=pl.BlockSpec((tm, cp), lambda i: (i, 0)),
        compiler_params=pltpu.CompilerParams(
            dimension_semantics=("parallel",),
            vmem_limit_bytes=48 << 20,
        ),
    )(a_p, w_p, scale, shift)

    del cparams  # (kept separate CompilerParams per call above)

    # Strip padding, back to NCHW to match the PyTorch module's output layout.
    out = out_flat[:m, :c_out].reshape(n, h_out, w_out, c_out)
    return jnp.transpose(out, (0, 3, 1, 2))


# --------------------------------------------------------------------------- #
# Pure-JAX reference: Conv2d (with bias) -> BatchNorm2d(training) -> ReLU.
# --------------------------------------------------------------------------- #
def _reference(x, weight, bias, gamma, beta, *, kernel_size, stride, padding):
    conv = jax.lax.conv_general_dilated(
        x, weight, window_strides=(stride, stride),
        padding=[(padding, padding), (padding, padding)],
        dimension_numbers=("NCHW", "OIHW", "NCHW"),
    ) + bias.reshape(1, -1, 1, 1)
    mean = jnp.mean(conv, axis=(0, 2, 3), keepdims=True)
    var = jnp.mean((conv - mean) ** 2, axis=(0, 2, 3), keepdims=True)
    y = (conv - mean) * jax.lax.rsqrt(var + BN_EPS)
    y = y * gamma.reshape(1, -1, 1, 1) + beta.reshape(1, -1, 1, 1)
    return jnp.maximum(y, 0.0)


if __name__ == "__main__":
    # ConvBlock(in_channels=4, out_channels=8, kernel_size=3, stride=1, padding=1)
    N, C_IN, H, W = 2, 4, 16, 16
    C_OUT, K, STRIDE, PAD = 8, 3, 1, 1

    key = jax.random.PRNGKey(0)
    kx, kw, kb = jax.random.split(key, 3)
    x = jax.random.normal(kx, (N, C_IN, H, W), dtype=jnp.float32)

    fan_in = C_IN * K * K
    weight = jax.random.normal(kw, (C_OUT, C_IN, K, K), dtype=jnp.float32) / math.sqrt(fan_in)
    bias = jax.random.normal(kb, (C_OUT,), dtype=jnp.float32) * 0.1
    gamma = jnp.ones((C_OUT,), dtype=jnp.float32)
    beta = jnp.zeros((C_OUT,), dtype=jnp.float32)

    out = conv_block_forward(x, weight, bias, gamma, beta,
                             kernel_size=K, stride=STRIDE, padding=PAD)
    out = jax.block_until_ready(out)

    ref = _reference(x, weight, bias, gamma, beta,
                     kernel_size=K, stride=STRIDE, padding=PAD)
    assert out.shape == (N, C_OUT, H, W), out.shape
    err = float(jnp.max(jnp.abs(out - ref)))
    assert jnp.allclose(out, ref, atol=1e-4, rtol=1e-4), err

    print("KERNEL_OK")
</pallas_src>

<mosaic_0001>
module attributes {stable_mosaic.version = 11 : i64} {
  func.func @_conv_stats_kernel(%arg0: i32, %arg1: i32, %arg2: memref<256x40xf32, #tpu.memory_space<vmem>>, %arg3: memref<40x128xf32, #tpu.memory_space<vmem>>, %arg4: memref<1x1x128xf32, #tpu.memory_space<vmem>>, %arg5: memref<1x1x128xf32, #tpu.memory_space<vmem>>) attributes {dimension_semantics = [#tpu.dimension_semantics<parallel>, #tpu.dimension_semantics<arbitrary>], iteration_bounds = array<i64: 2, 1>, scalar_prefetch = 0 : i64, scratch_operands = 0 : i64, tpu.core_type = #tpu.core_type<tc>, window_params = [{transform_indices = @transform_0, window_bounds = array<i64: 256, 40>}, {pipeline_mode = #tpu.pipeline_mode<synchronous>, transform_indices = @transform_1, window_bounds = array<i64: 40, 128>}, {transform_indices = @transform_2, window_bounds = array<i64: 1, 1, 128>}, {transform_indices = @transform_3, window_bounds = array<i64: 1, 1, 128>}]} {
    %c0_i32 = arith.constant 0 : i32
    %0 = arith.cmpi eq, %arg1, %c0_i32 : i32
    %1 = arith.extui %0 : i1 to i32
    %c0_i32_0 = arith.constant 0 : i32
    %2 = arith.cmpi ne, %1, %c0_i32_0 : i32
    scf.if %2 {
      %cst_18 = arith.constant 0.000000e+00 : f32
      %19 = vector.broadcast %cst_18 : f32 to vector<1x1x128xf32>
      %c0_19 = arith.constant 0 : index
      %c0_20 = arith.constant 0 : index
      %c0_21 = arith.constant 0 : index
      %20 = vector.load %arg4[%c0_19, %c0_20, %c0_21] : memref<1x1x128xf32, #tpu.memory_space<vmem>>, vector<1x1x128xf32>
      tpu.vector_store %arg4[%c0_19, %c0_20, %c0_21], %19 {strides = array<i32>} : memref<1x1x128xf32, #tpu.memory_space<vmem>>, vector<1x1x128xf32>,
      %cst_22 = arith.constant 0.000000e+00 : f32
      %21 = vector.broadcast %cst_22 : f32 to vector<1x1x128xf32>
      %c0_23 = arith.constant 0 : index
      %c0_24 = arith.constant 0 : index
      %c0_25 = arith.constant 0 : index
      %22 = vector.load %arg5[%c0_23, %c0_24, %c0_25] : memref<1x1x128xf32, #tpu.memory_space<vmem>>, vector<1x1x128xf32>
      tpu.vector_store %arg5[%c0_23, %c0_24, %c0_25], %21 {strides = array<i32>} : memref<1x1x128xf32, #tpu.memory_space<vmem>>, vector<1x1x128xf32>,
    } else {
    }
    %c0 = arith.constant 0 : index
    %c0_1 = arith.constant 0 : index
    %3 = vector.load %arg2[%c0, %c0_1] : memref<256x40xf32, #tpu.memory_space<vmem>>, vector<256x40xf32>
    %c0_2 = arith.constant 0 : index
    %c0_3 = arith.constant 0 : index
    %4 = vector.load %arg3[%c0_2, %c0_3] : memref<40x128xf32, #tpu.memory_space<vmem>>, vector<40x128xf32>
    %cst = arith.constant dense<0.000000e+00> : vector<256x128xf32>
    %5 = tpu.matmul %3, %4, %cst {dimension_numbers = #tpu.dot_dimension_numbers<[1], [0], [0], [1], [0, 0, 1, 1], [], []>} : vector<256x40xf32>, vector<40x128xf32>, vector<256x128xf32> -> vector<256x128xf32>
    %c0_4 = arith.constant 0 : index
    %c0_5 = arith.constant 0 : index
    %c0_6 = arith.constant 0 : index
    %6 = vector.load %arg4[%c0_4, %c0_5, %c0_6] : memref<1x1x128xf32, #tpu.memory_space<vmem>>, vector<1x1x128xf32>
    %cst_7 = arith.constant dense<0.000000e+00> : vector<128xf32>
    %7 = vector.multi_reduction <add>, %5, %cst_7 [0] : vector<256x128xf32> to vector<128xf32>
    %8 = vector.shape_cast %7 : vector<128xf32> to vector<1x128xf32>
    %9 = vector.shape_cast %8 : vector<1x128xf32> to vector<1x1x128xf32>
    %10 = arith.addf %6, %9 : vector<1x1x128xf32>
    %c0_8 = arith.constant 0 : index
    %c0_9 = arith.constant 0 : index
    %c0_10 = arith.constant 0 : index
    %11 = vector.load %arg4[%c0_8, %c0_9, %c0_10] : memref<1x1x128xf32, #tpu.memory_space<vmem>>, vector<1x1x128xf32>
    tpu.vector_store %arg4[%c0_8, %c0_9, %c0_10], %10 {strides = array<i32>} : memref<1x1x128xf32, #tpu.memory_space<vmem>>, vector<1x1x128xf32>,
    %c0_11 = arith.constant 0 : index
    %c0_12 = arith.constant 0 : index
    %c0_13 = arith.constant 0 : index
    %12 = vector.load %arg5[%c0_11, %c0_12, %c0_13] : memref<1x1x128xf32, #tpu.memory_space<vmem>>, vector<1x1x128xf32>
    %13 = arith.mulf %5, %5 : vector<256x128xf32>
    %cst_14 = arith.constant dense<0.000000e+00> : vector<128xf32>
    %14 = vector.multi_reduction <add>, %13, %cst_14 [0] : vector<256x128xf32> to vector<128xf32>
    %15 = vector.shape_cast %14 : vector<128xf32> to vector<1x128xf32>
    %16 = vector.shape_cast %15 : vector<1x128xf32> to vector<1x1x128xf32>
    %17 = arith.addf %12, %16 : vector<1x1x128xf32>
    %c0_15 = arith.constant 0 : index
    %c0_16 = arith.constant 0 : index
    %c0_17 = arith.constant 0 : index
    %18 = vector.load %arg5[%c0_15, %c0_16, %c0_17] : memref<1x1x128xf32, #tpu.memory_space<vmem>>, vector<1x1x128xf32>
    tpu.vector_store %arg5[%c0_15, %c0_16, %c0_17], %17 {strides = array<i32>} : memref<1x1x128xf32, #tpu.memory_space<vmem>>, vector<1x1x128xf32>,
    return
  }
  func.func @transform_0(%arg0: i32, %arg1: i32) -> (i32, i32) {
    %c1_i32 = arith.constant 1 : i32
    %0 = arith.muli %arg0, %c1_i32 : i32
    %1 = arith.addi %0, %arg1 : i32
    %c0_i32 = arith.constant 0 : i32
    %c0_i32_0 = arith.constant 0 : i32
    return %1, %c0_i32 : i32, i32
  }
  func.func @transform_1(%arg0: i32, %arg1: i32) -> (i32, i32) {
    %c0_i32 = arith.constant 0 : i32
    %c0_i32_0 = arith.constant 0 : i32
    %c0_i32_1 = arith.constant 0 : i32
    return %c0_i32, %c0_i32_0 : i32, i32
  }
  func.func @transform_2(%arg0: i32, %arg1: i32) -> (i32, i32, i32) {
    %c0_i32 = arith.constant 0 : i32
    %c0_i32_0 = arith.constant 0 : i32
    %c0_i32_1 = arith.constant 0 : i32
    return %arg0, %c0_i32, %c0_i32_0 : i32, i32, i32
  }
  func.func @transform_3(%arg0: i32, %arg1: i32) -> (i32, i32, i32) {
    %c0_i32 = arith.constant 0 : i32
    %c0_i32_0 = arith.constant 0 : i32
    %c0_i32_1 = arith.constant 0 : i32
    return %arg0, %c0_i32, %c0_i32_0 : i32, i32, i32
  }
}

module attributes {stable_mosaic.version = 11 : i64} {
  func.func @_conv_bn_relu_kernel(%arg0: i32, %arg1: memref<256x40xf32, #tpu.memory_space<vmem>>, %arg2: memref<40x128xf32, #tpu.memory_space<vmem>>, %arg3: memref<1x128xf32, #tpu.memory_space<vmem>>, %arg4: memref<1x128xf32, #tpu.memory_space<vmem>>, %arg5: memref<256x128xf32, #tpu.memory_space<vmem>>) attributes {dimension_semantics = [#tpu.dimension_semantics<parallel>], iteration_bounds = array<i64: 2>, scalar_prefetch = 0 : i64, scratch_operands = 0 : i64, tpu.core_type = #tpu.core_type<tc>, window_params = [{transform_indices = @transform_0, window_bounds = array<i64: 256, 40>}, {pipeline_mode = #tpu.pipeline_mode<synchronous>, transform_indices = @transform_1, window_bounds = array<i64: 40, 128>}, {pipeline_mode = #tpu.pipeline_mode<synchronous>, transform_indices = @transform_2, window_bounds = array<i64: 1, 128>}, {pipeline_mode = #tpu.pipeline_mode<synchronous>, transform_indices = @transform_3, window_bounds = array<i64: 1, 128>}, {transform_indices = @transform_4, window_bounds = array<i64: 256, 128>}]} {
    %c0 = arith.constant 0 : index
    %c0_0 = arith.constant 0 : index
    %0 = vector.load %arg1[%c0, %c0_0] : memref<256x40xf32, #tpu.memory_space<vmem>>, vector<256x40xf32>
    %c0_1 = arith.constant 0 : index
    %c0_2 = arith.constant 0 : index
    %1 = vector.load %arg2[%c0_1, %c0_2] : memref<40x128xf32, #tpu.memory_space<vmem>>, vector<40x128xf32>
    %cst = arith.constant dense<0.000000e+00> : vector<256x128xf32>
    %2 = tpu.matmul %0, %1, %cst {dimension_numbers = #tpu.dot_dimension_numbers<[1], [0], [0], [1], [0, 0, 1, 1], [], []>} : vector<256x40xf32>, vector<40x128xf32>, vector<256x128xf32> -> vector<256x128xf32>
    %c0_3 = arith.constant 0 : index
    %c0_4 = arith.constant 0 : index
    %3 = vector.load %arg3[%c0_3, %c0_4] : memref<1x128xf32, #tpu.memory_space<vmem>>, vector<1x128xf32>
    %4 = vector.broadcast %3 : vector<1x128xf32> to vector<256x128xf32>
    %5 = arith.mulf %2, %4 : vector<256x128xf32>
    %c0_5 = arith.constant 0 : index
    %c0_6 = arith.constant 0 : index
    %6 = vector.load %arg4[%c0_5, %c0_6] : memref<1x128xf32, #tpu.memory_space<vmem>>, vector<1x128xf32>
    %7 = vector.broadcast %6 : vector<1x128xf32> to vector<256x128xf32>
    %8 = arith.addf %5, %7 : vector<256x128xf32>
    %cst_7 = arith.constant 0.000000e+00 : f32
    %9 = vector.broadcast %cst_7 : f32 to vector<256x128xf32>
    %10 = arith.maximumf %8, %9 : vector<256x128xf32>
    %c0_8 = arith.constant 0 : index
    %c0_9 = arith.constant 0 : index
    %11 = vector.load %arg5[%c0_8, %c0_9] : memref<256x128xf32, #tpu.memory_space<vmem>>, vector<256x128xf32>
    tpu.vector_store %arg5[%c0_8, %c0_9], %10 {strides = array<i32>} : memref<256x128xf32, #tpu.memory_space<vmem>>, vector<256x128xf32>,
    return
  }
  func.func @transform_0(%arg0: i32) -> (i32, i32) {
    %c0_i32 = arith.constant 0 : i32
    %c0_i32_0 = arith.constant 0 : i32
    return %arg0, %c0_i32 : i32, i32
  }
  func.func @transform_1(%arg0: i32) -> (i32, i32) {
    %c0_i32 = arith.constant 0 : i32
    %c0_i32_0 = arith.constant 0 : i32
    %c0_i32_1 = arith.constant 0 : i32
    return %c0_i32, %c0_i32_0 : i32, i32
  }
  func.func @transform_2(%arg0: i32) -> (i32, i32) {
    %c0_i32 = arith.constant 0 : i32
    %c0_i32_0 = arith.constant 0 : i32
    %c0_i32_1 = arith.constant 0 : i32
    return %c0_i32, %c0_i32_0 : i32, i32
  }
  func.func @transform_3(%arg0: i32) -> (i32, i32) {
    %c0_i32 = arith.constant 0 : i32
    %c0_i32_0 = arith.constant 0 : i32
    %c0_i32_1 = arith.constant 0 : i32
    return %c0_i32, %c0_i32_0 : i32, i32
  }
  func.func @transform_4(%arg0: i32) -> (i32, i32) {
    %c0_i32 = arith.constant 0 : i32
    %c0_i32_0 = arith.constant 0 : i32
    return %arg0, %c0_i32 : i32, i32
  }
}

</mosaic_0001>

<llo_original>
// kernel: conv_block_forward.3
$region0: #{conv_block_forward.3}
  #allocation0 [shape = 'u32[]', space=smem, size = 0x4, offset = 0x4, fixed_abs, tag = 'smem constant byte address 0x4 - core index']
  #allocation1 [shape = 'u32[144,128]{1,0:T(1,128)}', space=vmem, size = 0x12000, scoped, tag = 'internal scratch']
  %s0 = inlined_call_operand.vmem [shape: f32[512,40], index: 0, kind: input, shape index: {}]
  %s1 = inlined_call_operand.vmem [shape: f32[40,128], index: 1, kind: input, shape index: {}]
  %s2 = inlined_call_operand.vmem [shape: f32[1,128], index: 2, kind: input, shape index: {}]
  %s3 = inlined_call_operand.vmem [shape: f32[1,128], index: 3, kind: input, shape index: {}]
  %s4 = inlined_call_operand.vmem [shape: f32[512,128], index: 4, kind: output, shape index: {}]
  %s5 = sld [smem:[#allocation0]]
  $region49: #{conv_block_forward.3} parent=0
    _
  %s7 = ssub.s32 1, %s5
  %s8 = scalar_select 0, %s7, %s5
  loop: start=0, step=1, limit=4
  $region2: #{conv_block_forward.3} parent=0 // loop_pre_header
    _
  $region3: #{conv_block_forward.3} parent=0 // loop_header
    %s10 = sphi 0, %s14
    %p11 = scmp.ge.s32.totalorder %s10, 4
    %s20 = sphi 0, %s22
    %s23 = sphi 0, %s20
    %s24 = sphi 0, %s23
    %s40 = sphi 0, %s24
    %s44 = sphi 0, %s44
    %s46 = sphi 0, %s44
    %s47 = sphi 0, %s46
    %s61 = sphi 0, %s47
    %s65 = sphi 0, %s65
    %s67 = sphi 0, %s65
    %s68 = sphi 0, %s67
    %s82 = sphi 0, %s68
    %s86 = sphi 0, %s86
    %s88 = sphi 0, %s86
    %s89 = sphi 0, %s88
    %s103 = sphi 0, %s89
    %s109 = sphi 0, %s111
    %s112 = sphi 0, %s109
    %s113 = sphi 0, %s112
    %s129 = sphi 0, %s113
  $region4: #{conv_block_forward.3} parent=0 // loop_header_branch
    %13 = sbr.rel (%p11) target = $region8
  $region5: #{conv_block_forward.3} parent=0 // loop_body
    %s15 = ssub.s32 %s10, 1
    %s16 = ssub.s32 %s10, 2
    %s17 = sadd.s32 %s10, 1
    %s18 = ssub.s32 %s10, %s17
    %p19 = scmp.eq.s32.totalorder %s18, 0
    %s21 = sadd.s32 %s20, 1
    %s22 = scalar_select %p19, %s20, %s21
    %p25 = pneg %p19
    %p26 = scmp.eq.s32.totalorder %s10, 1
    %p27 = por %p25, %p26
    %p28 = scmp.ne.s32.totalorder %s20, %s23
    %p29 = scmp.eq.s32.totalorder %s10, 0
    %p30 = por %p28, %p29
    %p31 = scmp.ne.s32.totalorder %s20, %s23
    %p32 = scmp.eq.s32.totalorder %s15, 1
    %p33 = por %p31, %p32
    %p34 = scmp.ne.s32.totalorder %s23, %s24
    %p35 = scmp.eq.s32.totalorder %s15, 0
    %p36 = por %p34, %p35
    %p37 = scmp.ne.s32.totalorder %s23, %s24
    %p38 = scmp.eq.s32.totalorder %s16, 1
    %p39 = por %p37, %p38
    %p41 = scmp.ne.s32.totalorder %s24, %s40
    %p42 = scmp.eq.s32.totalorder %s16, 0
    %p43 = por %p41, %p42
    %s45 = sadd.s32 %s44, 1
    %p48 = scmp.eq.s32.totalorder %s10, 1
    %p49 = scmp.ne.s32.totalorder %s44, %s46
    %p50 = scmp.eq.s32.totalorder %s10, 0
    %p51 = por %p49, %p50
    %p52 = scmp.ne.s32.totalorder %s44, %s46
    %p53 = scmp.eq.s32.totalorder %s15, 1
    %p54 = por %p52, %p53
    %p55 = scmp.ne.s32.totalorder %s46, %s47
    %p56 = scmp.eq.s32.totalorder %s15, 0
    %p57 = por %p55, %p56
    %p58 = scmp.ne.s32.totalorder %s46, %s47
    %p59 = scmp.eq.s32.totalorder %s16, 1
    %p60 = por %p58, %p59
    %p62 = scmp.ne.s32.totalorder %s47, %s61
    %p63 = scmp.eq.s32.totalorder %s16, 0
    %p64 = por %p62, %p63
    %s66 = sadd.s32 %s65, 1
    %p69 = scmp.eq.s32.totalorder %s10, 1
    %p70 = scmp.ne.s32.totalorder %s65, %s67
    %p71 = scmp.eq.s32.totalorder %s10, 0
    %p72 = por %p70, %p71
    %p73 = scmp.ne.s32.totalorder %s65, %s67
    %p74 = scmp.eq.s32.totalorder %s15, 1
    %p75 = por %p73, %p74
    %p76 = scmp.ne.s32.totalorder %s67, %s68
    %p77 = scmp.eq.s32.totalorder %s15, 0
    %p78 = por %p76, %p77
    %p79 = scmp.ne.s32.totalorder %s67, %s68
    %p80 = scmp.eq.s32.totalorder %s16, 1
    %p81 = por %p79, %p80
    %p83 = scmp.ne.s32.totalorder %s68, %s82
    %p84 = scmp.eq.s32.totalorder %s16, 0
    %p85 = por %p83, %p84
    %s87 = sadd.s32 %s86, 1
    %p90 = scmp.eq.s32.totalorder %s10, 1
    %p91 = scmp.ne.s32.totalorder %s86, %s88
    %p92 = scmp.eq.s32.totalorder %s10, 0
    %p93 = por %p91, %p92
    %p94 = scmp.ne.s32.totalorder %s86, %s88
    %p95 = scmp.eq.s32.totalorder %s15, 1
    %p96 = por %p94, %p95
    %p97 = scmp.ne.s32.totalorder %s88, %s89
    %p98 = scmp.eq.s32.totalorder %s15, 0
    %p99 = por %p97, %p98
    %p100 = scmp.ne.s32.totalorder %s88, %s89
    %p101 = scmp.eq.s32.totalorder %s16, 1
    %p102 = por %p100, %p101
    %p104 = scmp.ne.s32.totalorder %s89, %s103
    %p105 = scmp.eq.s32.totalorder %s16, 0
    %p106 = por %p104, %p105
    %s107 = ssub.s32 %s10, %s17
    %p108 = scmp.eq.s32.totalorder %s107, 0
    %s110 = sadd.s32 %s109, 1
    %s111 = scalar_select %p108, %s109, %s110
    %p114 = pneg %p108
    %p115 = scmp.eq.s32.totalorder %s10, 1
    %p116 = por %p114, %p115
    %p117 = scmp.ne.s32.totalorder %s109, %s112
    %p118 = scmp.eq.s32.totalorder %s10, 0
    %p119 = por %p117, %p118
    %p120 = scmp.ne.s32.totalorder %s109, %s112
    %p121 = scmp.eq.s32.totalorder %s15, 1
    %p122 = por %p120, %p121
    %p123 = scmp.ne.s32.totalorder %s112, %s113
    %p124 = scmp.eq.s32.totalorder %s15, 0
    %p125 = por %p123, %p124
    %p126 = scmp.ne.s32.totalorder %s112, %s113
    %p127 = scmp.eq.s32.totalorder %s16, 1
    %p128 = por %p126, %p127
    %p130 = scmp.ne.s32.totalorder %s113, %s129
    %p131 = scmp.eq.s32.totalorder %s16, 0
    %p132 = por %p130, %p131
    %p133 = scmp.le.s32.totalorder 1, %s10
    %p134 = scmp.lt.s32.totalorder %s10, 3
    %p135 = pnand %p133, %p134
    %p136 = pneg %p135
    // Predicated region
    $region9: #{conv_block_forward.3} parent=5 // pred_check
      _
    $region10: #{conv_block_forward.3} parent=5 // pred_check_branch
      %138 = sbr.rel (%p135) target = $region12
    $region11: #{conv_block_forward.3} parent=5 // pred_region
      %s139 = ssub.s32 %s10, 1
      // Predicated region
      $region13: #{conv_block_forward.3} parent=11 // pred_check
        %p140 = pneg %p57
      $region14: #{conv_block_forward.3} parent=11 // pred_check_branch
        %142 = sbr.rel (%p140) target = $region16
      $region15: #{conv_block_forward.3} parent=11 // pred_region
        _
      $region16: #{conv_block_forward.3} parent=11 // pred_fallthru
        _
      // Predicated region
      $region17: #{conv_block_forward.3} parent=11 // pred_check
        %p143 = pneg %p78
      $region18: #{conv_block_forward.3} parent=11 // pred_check_branch
        %145 = sbr.rel (%p143) target = $region20
      $region19: #{conv_block_forward.3} parent=11 // pred_region
        _
      $region20: #{conv_block_forward.3} parent=11 // pred_fallthru
        _
      // Predicated region
      $region21: #{conv_block_forward.3} parent=11 // pred_check
        %p146 = pneg %p99
      $region22: #{conv_block_forward.3} parent=11 // pred_check_branch
        %148 = sbr.rel (%p146) target = $region24
      $region23: #{conv_block_forward.3} parent=11 // pred_region
        _
      $region24: #{conv_block_forward.3} parent=11 // pred_fallthru
        _
    $region12: #{conv_block_forward.3} parent=5 // pred_fallthru
      _
    %p149 = scmp.lt.s32.totalorder %s10, 2
    // Predicated region
    $region25: #{conv_block_forward.3} parent=5 // pred_check
      %p150 = pneg %p149
    $region26: #{conv_block_forward.3} parent=5 // pred_check_branch
      %152 = sbr.rel (%p150) target = $region28
    $region27: #{conv_block_forward.3} parent=5 // pred_region
      // Predicated region
      $region29: #{conv_block_forward.3} parent=27 // pred_check
        %p153 = pneg %p30
      $region30: #{conv_block_forward.3} parent=27 // pred_check_branch
        %155 = sbr.rel (%p153) target = $region32
      $region31: #{conv_block_forward.3} parent=27 // pred_region
        %s156 = smul.u32 32, %s10
        %p157 = scmp.lt.s32.totalorder %s156, 63
        %s158 = scalar_select %p157, %s156, 63
        %s159 = smul.addr %s158, 8
        %s160 = scalar_lea.vmem %s0, %s159
        %s161 = smul.u32 32, %s10
      $region32: #{conv_block_forward.3} parent=27 // pred_fallthru
        _
    $region28: #{conv_block_forward.3} parent=5 // pred_fallthru
      _
    %p162 = scmp.le.s32.totalorder 1, %s10
    %p163 = scmp.lt.s32.totalorder %s10, 3
    %p164 = pnand %p162, %p163
    %p165 = pneg %p164
    // Predicated region
    $region33: #{conv_block_forward.3} parent=5 // pred_check
      _
    $region34: #{conv_block_forward.3} parent=5 // pred_check_branch
      %167 = sbr.rel (%p164) target = $region36
    $region35: #{conv_block_forward.3} parent=5 // pred_region
      %s168 = ssub.s32 %s10, 1
      %s169 = smul.u32 32, %s15
      %p170 = scmp.lt.s32.totalorder %s169, 63
      %s171 = scalar_select %p170, %s169, 63
      %s172 = smul.addr %s171, 8
      %s173 = scalar_lea.vmem %s0, %s172
      %p174 = pneg %p36
      %p175 = pneg %p33
      %p176 = pneg %p57
      %p177 = pneg %p54
      %p178 = pneg %p78
      %p179 = pneg %p75
      %p180 = pneg %p99
      %p181 = pneg %p96
      %p182 = pneg %p125
      %p183 = pneg %p122
      %s184 = smul.u32 32, %s15
      %p185 = scmp.lt.s32.totalorder %s184, 63
      %s186 = scalar_select %p185, %s184, 63
      %s187 = smul.addr %s186, 8
      %s188 = scalar_lea.vmem %s4, %s187
      %s189 = smul.u32 32, %s15
      %p190 = scmp.lt.s32.totalorder %s189, 63
      %s191 = scalar_select %p190, %s189, 63
      %s192 = smul.addr %s191, 8
      %s193 = scalar_lea.vmem %s0, %s192
      %s194 = smul.u32 32, %s15
      %s195 = smul.u32 32, %s15
      %p196 = scmp.lt.s32.totalorder %s195, 63
      %s197 = scalar_select %p196, %s195, 63
      %s198 = smul.addr %s197, 8
      %s199 = scalar_lea.vmem %s4, %s198
      %s200 = smul.u32 32, %s15
      %v201 = vld [vmem:[%s193] sm:$0xff]
      %v202 = vld [vmem:[%s193 + $0x8] sm:$0xff]
      %v203 = vld [vmem:[%s193 + $0x10] sm:$0xff]
      %v204 = vld [vmem:[%s193 + $0x18] sm:$0xff]
      %v205 = vld [vmem:[%s193 + $0x20] sm:$0xff]
      %v206 = vld [vmem:[%s193 + $0x28] sm:$0xff]
      %v207 = vld [vmem:[%s193 + $0x30] sm:$0xff]
      %v208 = vld [vmem:[%s193 + $0x38] sm:$0xff]
      %v209 = vld [vmem:[%s193 + $0x40] sm:$0xff]
      %v210 = vld [vmem:[%s193 + $0x48] sm:$0xff]
      %v211 = vld [vmem:[%s193 + $0x50] sm:$0xff]
      %v212 = vld [vmem:[%s193 + $0x58] sm:$0xff]
      %v213 = vld [vmem:[%s193 + $0x60] sm:$0xff]
      %v214 = vld [vmem:[%s193 + $0x68] sm:$0xff]
      %v215 = vld [vmem:[%s193 + $0x70] sm:$0xff]
      %v216 = vld [vmem:[%s193 + $0x78] sm:$0xff]
      %v217 = vld [vmem:[%s193 + $0x80] sm:$0xff]
      %v218 = vld [vmem:[%s193 + $0x88] sm:$0xff]
      %v219 = vld [vmem:[%s193 + $0x90] sm:$0xff]
      %v220 = vld [vmem:[%s193 + $0x98] sm:$0xff]
      %v221 = vld [vmem:[%s193 + $0xa0] sm:$0xff]
      %v222 = vld [vmem:[%s193 + $0xa8] sm:$0xff]
      %v223 = vld [vmem:[%s193 + $0xb0] sm:$0xff]
      %v224 = vld [vmem:[%s193 + $0xb8] sm:$0xff]
      %v225 = vld [vmem:[%s193 + $0xc0] sm:$0xff]
      %v226 = vld [vmem:[%s193 + $0xc8] sm:$0xff]
      %v227 = vld [vmem:[%s193 + $0xd0] sm:$0xff]
      %v228 = vld [vmem:[%s193 + $0xd8] sm:$0xff]
      %v229 = vld [vmem:[%s193 + $0xe0] sm:$0xff]
      %v230 = vld [vmem:[%s193 + $0xe8] sm:$0xff]
      %v231 = vld [vmem:[%s193 + $0xf0] sm:$0xff]
      %v232 = vld [vmem:[%s193 + $0xf8] sm:$0xff]
      %v233 = vld [vmem:[%s1] sm:$0xff]
      %v234 = vld [vmem:[%s1 + $0x8] sm:$0xff]
      %v235 = vld [vmem:[%s1 + $0x10] sm:$0xff]
      %v236 = vld [vmem:[%s1 + $0x18] sm:$0xff]
      %v237 = vld [vmem:[%s1 + $0x20] sm:$0xff]
      %vm238 = vcmask 326656
      %v240 = vsel %vm238, %v201, 0
      %v243 = vsel %vm238, %v202, 0
      %v246 = vsel %vm238, %v203, 0
      %v249 = vsel %vm238, %v204, 0
      %v252 = vsel %vm238, %v205, 0
      %v255 = vsel %vm238, %v206, 0
      %v258 = vsel %vm238, %v207, 0
      %v261 = vsel %vm238, %v208, 0
      %v264 = vsel %vm238, %v209, 0
      %v267 = vsel %vm238, %v210, 0
      %v270 = vsel %vm238, %v211, 0
      %v273 = vsel %vm238, %v212, 0
      %v276 = vsel %vm238, %v213, 0
      %v279 = vsel %vm238, %v214, 0
      %v282 = vsel %vm238, %v215, 0
      %v285 = vsel %vm238, %v216, 0
      %v288 = vsel %vm238, %v217, 0
      %v291 = vsel %vm238, %v218, 0
      %v294 = vsel %vm238, %v219, 0
      %v297 = vsel %vm238, %v220, 0
      %v300 = vsel %vm238, %v221, 0
      %v303 = vsel %vm238, %v222, 0
      %v306 = vsel %vm238, %v223, 0
      %v309 = vsel %vm238, %v224, 0
      %v312 = vsel %vm238, %v225, 0
      %v315 = vsel %vm238, %v226, 0
      %v318 = vsel %vm238, %v227, 0
      %v321 = vsel %vm238, %v228, 0
      %v324 = vsel %vm238, %v229, 0
      %v327 = vsel %vm238, %v230, 0
      %v330 = vsel %vm238, %v231, 0
      %v333 = vsel %vm238, %v232, 0
      %335 = vmatprep.subr.mxu0 0.0
      %336 = vmatpush1.msra.mxu0 %v233
      %337 = vmatprep.subr.mxu0 0.0
      %338 = vmatpush1.msra.mxu0 %v234
      %339 = vmatprep.subr.mxu0 0.0
      %340 = vmatpush1.msra.mxu0 %v235
      %341 = vmatprep.subr.mxu0 0.0
      %342 = vmatpush1.msra.mxu0 %v236
      %343 = vmatprep.subr.mxu0 0.0
      %344 = vmatpush1.msra.mxu0 %v237
      %345 = vmatprep.subr.mxu0 0.0
      %346 = vmatpush1.msra.mxu0 0.0
      %347 = vmatprep.subr.mxu0 0.0
      %348 = vmatpush1.msra.mxu0 0.0
      %349 = vmatprep.subr.mxu0 0.0
      %350 = vmatpush1.msra.mxu0 0.0
      %351 = vmatprep.subr.mxu0 0.0
      %352 = vmatpush1.msra.mxu0 0.0
      %353 = vmatprep.subr.mxu0 0.0
      %354 = vmatpush1.msra.mxu0 0.0
      %355 = vmatprep.subr.mxu0 0.0
      %356 = vmatpush1.msra.mxu0 0.0
      %357 = vmatprep.subr.mxu0 0.0
      %358 = vmatpush1.msra.mxu0 0.0
      %359 = vmatprep.subr.mxu0 0.0
      %360 = vmatpush1.msra.mxu0 0.0
      %361 = vmatprep.subr.mxu0 0.0
      %362 = vmatpush1.msra.mxu0 0.0
      %363 = vmatprep.subr.mxu0 0.0
      %364 = vmatpush1.msra.mxu0 0.0
      %365 = vmatprep.subr.mxu0 0.0
      %366 = vmatpush1.msra.mxu0 0.0
      %367 = vmatprep.subr.mxu0 0.0
      %368 = vmatpush1.msra.mxu0 0.0
      %369 = vmatprep.subr.mxu0 0.0
      %370 = vmatpush1.msra.mxu0 0.0
      %371 = vmatprep.subr.mxu0 0.0
      %372 = vmatpush1.msra.mxu0 0.0
      %373 = vmatprep.subr.mxu0 0.0
      %374 = vmatpush1.msra.mxu0 0.0
      %375 = vmatprep.subr.mxu0 0.0
      %376 = vmatpush1.msra.mxu0 0.0
      %377 = vmatprep.subr.mxu0 0.0
      %378 = vmatpush1.msra.mxu0 0.0
      %379 = vmatprep.subr.mxu0 0.0
      %380 = vmatpush1.msra.mxu0 0.0
      %381 = vmatprep.subr.mxu0 0.0
      %382 = vmatpush1.msra.mxu0 0.0
      %383 = vmatprep.subr.mxu0 0.0
      %384 = vmatpush1.msra.mxu0 0.0
      %385 = vmatprep.subr.mxu0 0.0
      %386 = vmatpush1.msra.mxu0 0.0
      %387 = vmatprep.subr.mxu0 0.0
      %388 = vmatpush1.msra.mxu0 0.0
      %389 = vmatprep.subr.mxu0 0.0
      %390 = vmatpush1.msra.mxu0 0.0
      %391 = vmatprep.subr.mxu0 0.0
      %392 = vmatpush1.msra.mxu0 0.0
      %393 = vmatprep.subr.mxu0 0.0
      %394 = vmatpush1.msra.mxu0 0.0
      %395 = vmatprep.subr.mxu0 0.0
      %396 = vmatpush1.msra.mxu0 0.0
      %397 = vmatprep.subr.mxu0 0.0
      %398 = vmatpush1.msra.mxu0 0.0
      %399 = vmatprep.mubr.f32.mxu0 0.0
      %400 = vmatmul.mubr.f32.gmra.mrb[0].mxu0 %v240
      %v401 = vpop.f32.mrb[0].mxu0
      %v402 = vadd.f32 0.0, %v401
      %v403 = vpop.f32.mrb[0].mxu0
      %404 = vmatprep.mubr.f32.mxu0 0.0
      %405 = vmatmul.mubr.f32.gmra.mrb[0].mxu0 %v243
      %v406 = vpop.f32.mrb[0].mxu0
      %v407 = vadd.f32 0.0, %v406
      %v408 = vpop.f32.mrb[0].mxu0
      %409 = vmatprep.mubr.f32.mxu0 0.0
      %410 = vmatmul.mubr.f32.gmra.mrb[0].mxu0 %v246
      %v411 = vpop.f32.mrb[0].mxu0
      %v412 = vadd.f32 0.0, %v411
      %v413 = vpop.f32.mrb[0].mxu0
      %414 = vmatprep.mubr.f32.mxu0 0.0
      %415 = vmatmul.mubr.f32.gmra.mrb[0].mxu0 %v249
      %v416 = vpop.f32.mrb[0].mxu0
      %v417 = vadd.f32 0.0, %v416
      %v418 = vpop.f32.mrb[0].mxu0
      %419 = vmatprep.mubr.f32.mxu0 0.0
      %420 = vmatmul.mubr.f32.gmra.mrb[0].mxu0 %v252
      %v421 = vpop.f32.mrb[0].mxu0
      %v422 = vadd.f32 0.0, %v421
      %v423 = vpop.f32.mrb[0].mxu0
      %424 = vmatprep.mubr.f32.mxu0 0.0
      %425 = vmatmul.mubr.f32.gmra.mrb[0].mxu0 %v255
      %v426 = vpop.f32.mrb[0].mxu0
      %v427 = vadd.f32 0.0, %v426
      %v428 = vpop.f32.mrb[0].mxu0
      %429 = vmatprep.mubr.f32.mxu0 0.0
      %430 = vmatmul.mubr.f32.gmra.mrb[0].mxu0 %v258
      %v431 = vpop.f32.mrb[0].mxu0
      %v432 = vadd.f32 0.0, %v431
      %v433 = vpop.f32.mrb[0].mxu0
      %434 = vmatprep.mubr.f32.mxu0 0.0
      %435 = vmatmul.mubr.f32.gmra.mrb[0].mxu0 %v261
      %v436 = vpop.f32.mrb[0].mxu0
      %v437 = vadd.f32 0.0, %v436
      %v438 = vpop.f32.mrb[0].mxu0
      %439 = vmatprep.mubr.f32.mxu0 0.0
      %440 = vmatmul.mubr.f32.gmra.mrb[0].mxu0 %v264
      %v441 = vpop.f32.mrb[0].mxu0
      %v442 = vadd.f32 0.0, %v441
      %v443 = vpop.f32.mrb[0].mxu0
      %444 = vmatprep.mubr.f32.mxu0 0.0
      %445 = vmatmul.mubr.f32.gmra.mrb[0].mxu0 %v267
      %v446 = vpop.f32.mrb[0].mxu0
      %v447 = vadd.f32 0.0, %v446
      %v448 = vpop.f32.mrb[0].mxu0
      %449 = vmatprep.mubr.f32.mxu0 0.0
      %450 = vmatmul.mubr.f32.gmra.mrb[0].mxu0 %v270
      %v451 = vpop.f32.mrb[0].mxu0
      %v452 = vadd.f32 0.0, %v451
      %v453 = vpop.f32.mrb[0].mxu0
      %454 = vmatprep.mubr.f32.mxu0 0.0
      %455 = vmatmul.mubr.f32.gmra.mrb[0].mxu0 %v273
      %v456 = vpop.f32.mrb[0].mxu0
      %v457 = vadd.f32 0.0, %v456
      %v458 = vpop.f32.mrb[0].mxu0
      %459 = vmatprep.mubr.f32.mxu0 0.0
      %460 = vmatmul.mubr.f32.gmra.mrb[0].mxu0 %v276
      %v461 = vpop.f32.mrb[0].mxu0
      %v462 = vadd.f32 0.0, %v461
      %v463 = vpop.f32.mrb[0].mxu0
      %464 = vmatprep.mubr.f32.mxu0 0.0
      %465 = vmatmul.mubr.f32.gmra.mrb[0].mxu0 %v279
      %v466 = vpop.f32.mrb[0].mxu0
      %v467 = vadd.f32 0.0, %v466
      %v468 = vpop.f32.mrb[0].mxu0
      %469 = vmatprep.mubr.f32.mxu0 0.0
      %470 = vmatmul.mubr.f32.gmra.mrb[0].mxu0 %v282
      %v471 = vpop.f32.mrb[0].mxu0
      %v472 = vadd.f32 0.0, %v471
      %v473 = vpop.f32.mrb[0].mxu0
      %474 = vmatprep.mubr.f32.mxu0 0.0
      %475 = vmatmul.mubr.f32.gmra.mrb[0].mxu0 %v285
      %v476 = vpop.f32.mrb[0].mxu0
      %v477 = vadd.f32 0.0, %v476
      %v478 = vpop.f32.mrb[0].mxu0
      %479 = vmatprep.mubr.f32.mxu0 0.0
      %480 = vmatmul.mubr.f32.gmra.mrb[0].mxu0 %v288
      %v481 = vpop.f32.mrb[0].mxu0
      %v482 = vadd.f32 0.0, %v481
      %v483 = vpop.f32.mrb[0].mxu0
      %484 = vmatprep.mubr.f32.mxu0 0.0
      %485 = vmatmul.mubr.f32.gmra.mrb[0].mxu0 %v291
      %v486 = vpop.f32.mrb[0].mxu0
      %v487 = vadd.f32 0.0, %v486
      %v488 = vpop.f32.mrb[0].mxu0
      %489 = vmatprep.mubr.f32.mxu0 0.0
      %490 = vmatmul.mubr.f32.gmra.mrb[0].mxu0 %v294
      %v491 = vpop.f32.mrb[0].mxu0
      %v492 = vadd.f32 0.0, %v491
      %v493 = vpop.f32.mrb[0].mxu0
      %494 = vmatprep.mubr.f32.mxu0 0.0
      %495 = vmatmul.mubr.f32.gmra.mrb[0].mxu0 %v297
      %v496 = vpop.f32.mrb[0].mxu0
      %v497 = vadd.f32 0.0, %v496
      %v498 = vpop.f32.mrb[0].mxu0
      %499 = vmatprep.mubr.f32.mxu0 0.0
      %500 = vmatmul.mubr.f32.gmra.mrb[0].mxu0 %v300
      %v501 = vpop.f32.mrb[0].mxu0
      %v502 = vadd.f32 0.0, %v501
      %v503 = vpop.f32.mrb[0].mxu0
      %504 = vmatprep.mubr.f32.mxu0 0.0
      %505 = vmatmul.mubr.f32.gmra.mrb[0].mxu0 %v303
      %v506 = vpop.f32.mrb[0].mxu0
      %v507 = vadd.f32 0.0, %v506
      %v508 = vpop.f32.mrb[0].mxu0
      %509 = vmatprep.mubr.f32.mxu0 0.0
      %510 = vmatmul.mubr.f32.gmra.mrb[0].mxu0 %v306
      %v511 = vpop.f32.mrb[0].mxu0
      %v512 = vadd.f32 0.0, %v511
      %v513 = vpop.f32.mrb[0].mxu0
      %514 = vmatprep.mubr.f32.mxu0 0.0
      %515 = vmatmul.mubr.f32.gmra.mrb[0].mxu0 %v309
      %v516 = vpop.f32.mrb[0].mxu0
      %v517 = vadd.f32 0.0, %v516
      %v518 = vpop.f32.mrb[0].mxu0
      %519 = vmatprep.mubr.f32.mxu0 0.0
      %520 = vmatmul.mubr.f32.gmra.mrb[0].mxu0 %v312
      %v521 = vpop.f32.mrb[0].mxu0
      %v522 = vadd.f32 0.0, %v521
      %v523 = vpop.f32.mrb[0].mxu0
      %524 = vmatprep.mubr.f32.mxu0 0.0
      %525 = vmatmul.mubr.f32.gmra.mrb[0].mxu0 %v315
      %v526 = vpop.f32.mrb[0].mxu0
      %v527 = vadd.f32 0.0, %v526
      %v528 = vpop.f32.mrb[0].mxu0
      %529 = vmatprep.mubr.f32.mxu0 0.0
      %530 = vmatmul.mubr.f32.gmra.mrb[0].mxu0 %v318
      %v531 = vpop.f32.mrb[0].mxu0
      %v532 = vadd.f32 0.0, %v531
      %v533 = vpop.f32.mrb[0].mxu0
      %534 = vmatprep.mubr.f32.mxu0 0.0
      %535 = vmatmul.mubr.f32.gmra.mrb[0].mxu0 %v321
      %v536 = vpop.f32.mrb[0].mxu0
      %v537 = vadd.f32 0.0, %v536
      %v538 = vpop.f32.mrb[0].mxu0
      %539 = vmatprep.mubr.f32.mxu0 0.0
      %540 = vmatmul.mubr.f32.gmra.mrb[0].mxu0 %v324
      %v541 = vpop.f32.mrb[0].mxu0
      %v542 = vadd.f32 0.0, %v541
      %v543 = vpop.f32.mrb[0].mxu0
      %544 = vmatprep.mubr.f32.mxu0 0.0
      %545 = vmatmul.mubr.f32.gmra.mrb[0].mxu0 %v327
      %v546 = vpop.f32.mrb[0].mxu0
      %v547 = vadd.f32 0.0, %v546
      %v548 = vpop.f32.mrb[0].mxu0
      %549 = vmatprep.mubr.f32.mxu0 0.0
      %550 = vmatmul.mubr.f32.gmra.mrb[0].mxu0 %v330
      %v551 = vpop.f32.mrb[0].mxu0
      %v552 = vadd.f32 0.0, %v551
      %v553 = vpop.f32.mrb[0].mxu0
      %554 = vmatprep.mubr.f32.mxu0 0.0
      %555 = vmatmul.mubr.f32.gmra.mrb[0].mxu0 %v333
      %v556 = vpop.f32.mrb[0].mxu0
      %v557 = vadd.f32 0.0, %v556
      %v558 = vpop.f32.mrb[0].mxu0
      %559 = vdwg.mxu0
      %v560 = vld [vmem:[%s2] sm:$0x1]
      %v562 = vlaneseq
      %v563 = vshrl.u32 %v562, 7
      %v564 = vsub.s32 0, %v563
      %v565 = vrot.slane %v560, %v564
      %v567 = vmul.f32 %v402, %v565
      %v568 = vmul.f32 %v407, %v565
      %v569 = vmul.f32 %v412, %v565
      %v570 = vmul.f32 %v417, %v565
      %v571 = vmul.f32 %v422, %v565
      %v572 = vmul.f32 %v427, %v565
      %v573 = vmul.f32 %v432, %v565
      %v574 = vmul.f32 %v437, %v565
      %v575 = vmul.f32 %v442, %v565
      %v576 = vmul.f32 %v447, %v565
      %v577 = vmul.f32 %v452, %v565
      %v578 = vmul.f32 %v457, %v565
      %v579 = vmul.f32 %v462, %v565
      %v580 = vmul.f32 %v467, %v565
      %v581 = vmul.f32 %v472, %v565
      %v582 = vmul.f32 %v477, %v565
      %v583 = vmul.f32 %v482, %v565
      %v584 = vmul.f32 %v487, %v565
      %v585 = vmul.f32 %v492, %v565
      %v586 = vmul.f32 %v497, %v565
      %v587 = vmul.f32 %v502, %v565
      %v588 = vmul.f32 %v507, %v565
      %v589 = vmul.f32 %v512, %v565
      %v590 = vmul.f32 %v517, %v565
      %v591 = vmul.f32 %v522, %v565
      %v592 = vmul.f32 %v527, %v565
      %v593 = vmul.f32 %v532, %v565
      %v594 = vmul.f32 %v537, %v565
      %v595 = vmul.f32 %v542, %v565
      %v596 = vmul.f32 %v547, %v565
      %v597 = vmul.f32 %v552, %v565
      %v598 = vmul.f32 %v557, %v565
      %v599 = vld [vmem:[%s3] sm:$0x1]
      %v601 = vlaneseq
      %v602 = vshrl.u32 %v601, 7
      %v603 = vsub.s32 0, %v602
      %v604 = vrot.slane %v599, %v603
      %v606 = vadd.f32 %v567, %v604
      %v607 = vadd.f32 %v568, %v604
      %v608 = vadd.f32 %v569, %v604
      %v609 = vadd.f32 %v570, %v604
      %v610 = vadd.f32 %v571, %v604
      %v611 = vadd.f32 %v572, %v604
      %v612 = vadd.f32 %v573, %v604
      %v613 = vadd.f32 %v574, %v604
      %v614 = vadd.f32 %v575, %v604
      %v615 = vadd.f32 %v576, %v604
      %v616 = vadd.f32 %v577, %v604
      %v617 = vadd.f32 %v578, %v604
      %v618 = vadd.f32 %v579, %v604
      %v619 = vadd.f32 %v580, %v604
      %v620 = vadd.f32 %v581, %v604
      %v621 = vadd.f32 %v582, %v604
      %v622 = vadd.f32 %v583, %v604
      %v623 = vadd.f32 %v584, %v604
      %v624 = vadd.f32 %v585, %v604
      %v625 = vadd.f32 %v586, %v604
      %v626 = vadd.f32 %v587, %v604
      %v627 = vadd.f32 %v588, %v604
      %v628 = vadd.f32 %v589, %v604
      %v629 = vadd.f32 %v590, %v604
      %v630 = vadd.f32 %v591, %v604
      %v631 = vadd.f32 %v592, %v604
      %v632 = vadd.f32 %v593, %v604
      %v633 = vadd.f32 %v594, %v604
      %v634 = vadd.f32 %v595, %v604
      %v635 = vadd.f32 %v596, %v604
      %v636 = vadd.f32 %v597, %v604
      %v637 = vadd.f32 %v598, %v604
      %v638 = vmax.f32 %v606, 0.0
      %v639 = vmax.f32 %v607, 0.0
      %v640 = vmax.f32 %v608, 0.0
      %v641 = vmax.f32 %v609, 0.0
      %v642 = vmax.f32 %v610, 0.0
      %v643 = vmax.f32 %v611, 0.0
      %v644 = vmax.f32 %v612, 0.0
      %v645 = vmax.f32 %v613, 0.0
      %v646 = vmax.f32 %v614, 0.0
      %v647 = vmax.f32 %v615, 0.0
      %v648 = vmax.f32 %v616, 0.0
      %v649 = vmax.f32 %v617, 0.0
      %v650 = vmax.f32 %v618, 0.0
      %v651 = vmax.f32 %v619, 0.0
      %v652 = vmax.f32 %v620, 0.0
      %v653 = vmax.f32 %v621, 0.0
      %v654 = vmax.f32 %v622, 0.0
      %v655 = vmax.f32 %v623, 0.0
      %v656 = vmax.f32 %v624, 0.0
      %v657 = vmax.f32 %v625, 0.0
      %v658 = vmax.f32 %v626, 0.0
      %v659 = vmax.f32 %v627, 0.0
      %v660 = vmax.f32 %v628, 0.0
      %v661 = vmax.f32 %v629, 0.0
      %v662 = vmax.f32 %v630, 0.0
      %v663 = vmax.f32 %v631, 0.0
      %v664 = vmax.f32 %v632, 0.0
      %v665 = vmax.f32 %v633, 0.0
      %v666 = vmax.f32 %v634, 0.0
      %v667 = vmax.f32 %v635, 0.0
      %v668 = vmax.f32 %v636, 0.0
      %v669 = vmax.f32 %v637, 0.0
      %670 = vst [vmem:[%s199] sm:$0xff] %v638
      %671 = vst [vmem:[%s199 + $0x8] sm:$0xff] %v639
      %672 = vst [vmem:[%s199 + $0x10] sm:$0xff] %v640
      %673 = vst [vmem:[%s199 + $0x18] sm:$0xff] %v641
      %674 = vst [vmem:[%s199 + $0x20] sm:$0xff] %v642
      %675 = vst [vmem:[%s199 + $0x28] sm:$0xff] %v643
      %676 = vst [vmem:[%s199 + $0x30] sm:$0xff] %v644
      %677 = vst [vmem:[%s199 + $0x38] sm:$0xff] %v645
      %678 = vst [vmem:[%s199 + $0x40] sm:$0xff] %v646
      %679 = vst [vmem:[%s199 + $0x48] sm:$0xff] %v647
      %680 = vst [vmem:[%s199 + $0x50] sm:$0xff] %v648
      %681 = vst [vmem:[%s199 + $0x58] sm:$0xff] %v649
      %682 = vst [vmem:[%s199 + $0x60] sm:$0xff] %v650
      %683 = vst [vmem:[%s199 + $0x68] sm:$0xff] %v651
      %684 = vst [vmem:[%s199 + $0x70] sm:$0xff] %v652
      %685 = vst [vmem:[%s199 + $0x78] sm:$0xff] %v653
      %686 = vst [vmem:[%s199 + $0x80] sm:$0xff] %v654
      %687 = vst [vmem:[%s199 + $0x88] sm:$0xff] %v655
      %688 = vst [vmem:[%s199 + $0x90] sm:$0xff] %v656
      %689 = vst [vmem:[%s199 + $0x98] sm:$0xff] %v657
      %690 = vst [vmem:[%s199 + $0xa0] sm:$0xff] %v658
      %691 = vst [vmem:[%s199 + $0xa8] sm:$0xff] %v659
      %692 = vst [vmem:[%s199 + $0xb0] sm:$0xff] %v660
      %693 = vst [vmem:[%s199 + $0xb8] sm:$0xff] %v661
      %694 = vst [vmem:[%s199 + $0xc0] sm:$0xff] %v662
      %695 = vst [vmem:[%s199 + $0xc8] sm:$0xff] %v663
      %696 = vst [vmem:[%s199 + $0xd0] sm:$0xff] %v664
      %697 = vst [vmem:[%s199 + $0xd8] sm:$0xff] %v665
      %698 = vst [vmem:[%s199 + $0xe0] sm:$0xff] %v666
      %699 = vst [vmem:[%s199 + $0xe8] sm:$0xff] %v667
      %700 = vst [vmem:[%s199 + $0xf0] sm:$0xff] %v668
      %701 = vst [vmem:[%s199 + $0xf8] sm:$0xff] %v669
      %s702 = smul.u32 32, %s15
      %p703 = scmp.lt.s32.totalorder %s702, 63
      %s704 = scalar_select %p703, %s702, 63
      %s705 = smul.addr %s704, 8
      %s706 = scalar_lea.vmem %s4, %s705
      // Predicated region
      $region37: #{conv_block_forward.3} parent=35 // pred_check
        %p707 = pneg %p122
      $region38: #{conv_block_forward.3} parent=35 // pred_check_branch
        %709 = sbr.rel (%p707) target = $region40
      $region39: #{conv_block_forward.3} parent=35 // pred_region
        %s710 = smul.u32 32, %s15
      $region40: #{conv_block_forward.3} parent=35 // pred_fallthru
        _
    $region36: #{conv_block_forward.3} parent=5 // pred_fallthru
      _
    %p711 = scmp.le.s32.totalorder 2, %s10
    // Predicated region
    $region41: #{conv_block_forward.3} parent=5 // pred_check
      %p712 = pneg %p711
    $region42: #{conv_block_forward.3} parent=5 // pred_check_branch
      %714 = sbr.rel (%p712) target = $region44
    $region43: #{conv_block_forward.3} parent=5 // pred_region
      %s715 = ssub.s32 %s10, 2
      // Predicated region
      $region45: #{conv_block_forward.3} parent=43 // pred_check
        %p716 = pneg %p128
      $region46: #{conv_block_forward.3} parent=43 // pred_check_branch
        %718 = sbr.rel (%p716) target = $region48
      $region47: #{conv_block_forward.3} parent=43 // pred_region
        %s719 = smul.u32 32, %s16
        %p720 = scmp.lt.s32.totalorder %s719, 63
        %s721 = scalar_select %p720, %s719, 63
        %s722 = smul.addr %s721, 8
        %s723 = scalar_lea.vmem %s4, %s722
      $region48: #{conv_block_forward.3} parent=43 // pred_fallthru
        _
    $region44: #{conv_block_forward.3} parent=5 // pred_fallthru
      _
  $region6: #{conv_block_forward.3} parent=0 // loop_footer
    %s14 = sadd.s32 1, %s10
  $region7: #{conv_block_forward.3} parent=0 // loop_footer_branch
    %9 = sbr.rel target = $region3
  $region8: #{conv_block_forward.3} parent=0 // loop_exit
    _

// kernel: conv_block_forward.2
$region0: #{conv_block_forward.2}
  #allocation0 [shape = 'u32[]', space=smem, size = 0x4, offset = 0x4, fixed_abs, tag = 'smem constant byte address 0x4 - core index']
  #allocation1 [shape = 'u32[144,128]{1,0:T(1,128)}', space=vmem, size = 0x12000, scoped, tag = 'internal scratch']
  %s0 = inlined_call_operand.vmem [shape: f32[512,40], index: 0, kind: input, shape index: {}]
  %s1 = inlined_call_operand.vmem [shape: f32[40,128], index: 1, kind: input, shape index: {}]
  %s2 = inlined_call_operand.vmem [shape: f32[2,1,128], index: 2, kind: output, shape index: {0}]
  %s3 = inlined_call_operand.vmem [shape: f32[2,1,128], index: 3, kind: output, shape index: {1}]
  %4 = xla_tuple %s2, %s3
  %s5 = sld [smem:[#allocation0]]
  $region53: #{conv_block_forward.2} parent=0
    _
  %s7 = ssub.s32 1, %s5
  %s8 = scalar_select 0, %s7, %s5
  loop: start=0, step=1, limit=4
  $region2: #{conv_block_forward.2} parent=0 // loop_pre_header
    _
  $region3: #{conv_block_forward.2} parent=0 // loop_header
    %s10 = sphi 0, %s14
    %p11 = scmp.ge.s32.totalorder %s10, 4
    %s17 = sphi 0, %s29
    %s18 = sphi 0, %s25
    %s19 = sphi 0, %s17
    %s20 = sphi 0, %s18
    %s21 = sphi 0, %s19
    %s22 = sphi 0, %s20
    %s34 = sphi 0, %s36
    %s37 = sphi 0, %s34
    %s38 = sphi 0, %s37
    %s54 = sphi 0, %s38
    %s58 = sphi 0, %s58
    %s60 = sphi 0, %s58
    %s61 = sphi 0, %s60
    %s75 = sphi 0, %s61
    %s81 = sphi 0, %s83
    %s84 = sphi 0, %s81
    %s85 = sphi 0, %s84
    %s101 = sphi 0, %s85
    %s107 = sphi 0, %s109
    %s110 = sphi 0, %s107
    %s111 = sphi 0, %s110
    %s127 = sphi 0, %s111
  $region4: #{conv_block_forward.2} parent=0 // loop_header_branch
    %13 = sbr.rel (%p11) target = $region8
  $region5: #{conv_block_forward.2} parent=0 // loop_body
    %s15 = ssub.s32 %s10, 1
    %s16 = ssub.s32 %s10, 2
    %s23 = sadd.s32 1, %s18
    %p24 = scmp.ge.s32.totalorder %s23, 1
    %s25 = scalar_select %p24, 0, %s23
    %s26 = sadd.s32 1, %s17
    %s27 = scalar_select %p24, %s26, %s17
    %p28 = scmp.ge.s32.totalorder %s27, 2
    %s29 = scalar_select %p28, 0, %s27
    %s30 = sadd.s32 %s17, %s18
    %s31 = sadd.s32 %s29, %s25
    %s32 = ssub.s32 %s30, %s31
    %p33 = scmp.eq.s32.totalorder %s32, 0
    %s35 = sadd.s32 %s34, 1
    %s36 = scalar_select %p33, %s34, %s35
    %p39 = pneg %p33
    %p40 = scmp.eq.s32.totalorder %s10, 1
    %p41 = por %p39, %p40
    %p42 = scmp.ne.s32.totalorder %s34, %s37
    %p43 = scmp.eq.s32.totalorder %s10, 0
    %p44 = por %p42, %p43
    %p45 = scmp.ne.s32.totalorder %s34, %s37
    %p46 = scmp.eq.s32.totalorder %s15, 1
    %p47 = por %p45, %p46
    %p48 = scmp.ne.s32.totalorder %s37, %s38
    %p49 = scmp.eq.s32.totalorder %s15, 0
    %p50 = por %p48, %p49
    %p51 = scmp.ne.s32.totalorder %s37, %s38
    %p52 = scmp.eq.s32.totalorder %s16, 1
    %p53 = por %p51, %p52
    %p55 = scmp.ne.s32.totalorder %s38, %s54
    %p56 = scmp.eq.s32.totalorder %s16, 0
    %p57 = por %p55, %p56
    %s59 = sadd.s32 %s58, 1
    %p62 = scmp.eq.s32.totalorder %s10, 1
    %p63 = scmp.ne.s32.totalorder %s58, %s60
    %p64 = scmp.eq.s32.totalorder %s10, 0
    %p65 = por %p63, %p64
    %p66 = scmp.ne.s32.totalorder %s58, %s60
    %p67 = scmp.eq.s32.totalorder %s15, 1
    %p68 = por %p66, %p67
    %p69 = scmp.ne.s32.totalorder %s60, %s61
    %p70 = scmp.eq.s32.totalorder %s15, 0
    %p71 = por %p69, %p70
    %p72 = scmp.ne.s32.totalorder %s60, %s61
    %p73 = scmp.eq.s32.totalorder %s16, 1
    %p74 = por %p72, %p73
    %p76 = scmp.ne.s32.totalorder %s61, %s75
    %p77 = scmp.eq.s32.totalorder %s16, 0
    %p78 = por %p76, %p77
    %s79 = ssub.s32 %s17, %s29
    %p80 = scmp.eq.s32.totalorder %s79, 0
    %s82 = sadd.s32 %s81, 1
    %s83 = scalar_select %p80, %s81, %s82
    %p86 = pneg %p80
    %p87 = scmp.eq.s32.totalorder %s10, 1
    %p88 = por %p86, %p87
    %p89 = scmp.ne.s32.totalorder %s81, %s84
    %p90 = scmp.eq.s32.totalorder %s10, 0
    %p91 = por %p89, %p90
    %p92 = scmp.ne.s32.totalorder %s81, %s84
    %p93 = scmp.eq.s32.totalorder %s15, 1
    %p94 = por %p92, %p93
    %p95 = scmp.ne.s32.totalorder %s84, %s85
    %p96 = scmp.eq.s32.totalorder %s15, 0
    %p97 = por %p95, %p96
    %p98 = scmp.ne.s32.totalorder %s84, %s85
    %p99 = scmp.eq.s32.totalorder %s16, 1
    %p100 = por %p98, %p99
    %p102 = scmp.ne.s32.totalorder %s85, %s101
    %p103 = scmp.eq.s32.totalorder %s16, 0
    %p104 = por %p102, %p103
    %s105 = ssub.s32 %s17, %s29
    %p106 = scmp.eq.s32.totalorder %s105, 0
    %s108 = sadd.s32 %s107, 1
    %s109 = scalar_select %p106, %s107, %s108
    %p112 = pneg %p106
    %p113 = scmp.eq.s32.totalorder %s10, 1
    %p114 = por %p112, %p113
    %p115 = scmp.ne.s32.totalorder %s107, %s110
    %p116 = scmp.eq.s32.totalorder %s10, 0
    %p117 = por %p115, %p116
    %p118 = scmp.ne.s32.totalorder %s107, %s110
    %p119 = scmp.eq.s32.totalorder %s15, 1
    %p120 = por %p118, %p119
    %p121 = scmp.ne.s32.totalorder %s110, %s111
    %p122 = scmp.eq.s32.totalorder %s15, 0
    %p123 = por %p121, %p122
    %p124 = scmp.ne.s32.totalorder %s110, %s111
    %p125 = scmp.eq.s32.totalorder %s16, 1
    %p126 = por %p124, %p125
    %p128 = scmp.ne.s32.totalorder %s111, %s127
    %p129 = scmp.eq.s32.totalorder %s16, 0
    %p130 = por %p128, %p129
    %p131 = scmp.le.s32.totalorder 1, %s10
    %p132 = scmp.lt.s32.totalorder %s10, 3
    %p133 = pnand %p131, %p132
    %p134 = pneg %p133
    // Predicated region
    $region9: #{conv_block_forward.2} parent=5 // pred_check
      _
    $region10: #{conv_block_forward.2} parent=5 // pred_check_branch
      %136 = sbr.rel (%p133) target = $region12
    $region11: #{conv_block_forward.2} parent=5 // pred_region
      %s137 = ssub.s32 %s10, 1
      // Predicated region
      $region13: #{conv_block_forward.2} parent=11 // pred_check
        %p138 = pneg %p71
      $region14: #{conv_block_forward.2} parent=11 // pred_check_branch
        %140 = sbr.rel (%p138) target = $region16
      $region15: #{conv_block_forward.2} parent=11 // pred_region
        _
      $region16: #{conv_block_forward.2} parent=11 // pred_fallthru
        _
    $region12: #{conv_block_forward.2} parent=5 // pred_fallthru
      _
    %p141 = scmp.lt.s32.totalorder %s10, 2
    // Predicated region
    $region17: #{conv_block_forward.2} parent=5 // pred_check
      %p142 = pneg %p141
    $region18: #{conv_block_forward.2} parent=5 // pred_check_branch
      %144 = sbr.rel (%p142) target = $region20
    $region19: #{conv_block_forward.2} parent=5 // pred_region
      // Predicated region
      $region21: #{conv_block_forward.2} parent=19 // pred_check
        %p145 = pneg %p44
      $region22: #{conv_block_forward.2} parent=19 // pred_check_branch
        %147 = sbr.rel (%p145) target = $region24
      $region23: #{conv_block_forward.2} parent=19 // pred_region
        %s148 = sadd.s32 %s17, %s18
        %s149 = smul.u32 32, %s148
        %p150 = scmp.lt.s32.totalorder %s149, 63
        %s151 = scalar_select %p150, %s149, 63
        %s152 = smul.addr %s151, 8
        %s153 = scalar_lea.vmem %s0, %s152
        %s154 = sadd.s32 %s17, %s18
        %s155 = smul.u32 32, %s154
      $region24: #{conv_block_forward.2} parent=19 // pred_fallthru
        _
    $region20: #{conv_block_forward.2} parent=5 // pred_fallthru
      _
    %p156 = scmp.le.s32.totalorder 1, %s10
    %p157 = scmp.lt.s32.totalorder %s10, 3
    %p158 = pnand %p156, %p157
    %p159 = pneg %p158
    // Predicated region
    $region25: #{conv_block_forward.2} parent=5 // pred_check
      _
    $region26: #{conv_block_forward.2} parent=5 // pred_check_branch
      %161 = sbr.rel (%p158) target = $region28
    $region27: #{conv_block_forward.2} parent=5 // pred_region
      %s162 = ssub.s32 %s10, 1
      %s163 = sadd.s32 %s19, %s20
      %s164 = smul.u32 32, %s163
      %p165 = scmp.lt.s32.totalorder %s164, 63
      %s166 = scalar_select %p165, %s164, 63
      %s167 = smul.addr %s166, 8
      %s168 = scalar_lea.vmem %s0, %s167
      %p169 = pneg %p50
      %p170 = pneg %p47
      %p171 = pneg %p71
      %p172 = pneg %p68
      %p173 = pneg %p97
      %p174 = pneg %p94
      %p175 = scmp.lt.s32.totalorder %s19, 1
      %s176 = scalar_select %p175, %s19, 1
      %s177 = scalar_lea.vmem %s2, %s176
      %p178 = pneg %p123
      %p179 = pneg %p120
      %p180 = scmp.lt.s32.totalorder %s19, 1
      %s181 = scalar_select %p180, %s19, 1
      %s182 = scalar_lea.vmem %s3, %s181
      %s183 = sadd.s32 %s19, %s20
      %s184 = smul.u32 32, %s183
      %p185 = scmp.lt.s32.totalorder %s184, 63
      %s186 = scalar_select %p185, %s184, 63
      %s187 = smul.addr %s186, 8
      %s188 = scalar_lea.vmem %s0, %s187
      %s189 = sadd.s32 %s19, %s20
      %s190 = smul.u32 32, %s189
      %p191 = scmp.lt.s32.totalorder %s19, 1
      %s192 = scalar_select %p191, %s19, 1
      %s193 = scalar_lea.vmem %s2, %s192
      %p194 = scmp.lt.s32.totalorder %s19, 1
      %s195 = scalar_select %p194, %s19, 1
      %s196 = scalar_lea.vmem %s3, %s195
      %p197 = scmp.eq.s32.totalorder %s20, 0
      // Predicated region
      $region29: #{conv_block_forward.2} parent=27 // pred_check
        %p198 = pneg %p197
      $region30: #{conv_block_forward.2} parent=27 // pred_check_branch
        %200 = sbr.rel (%p198) target = $region32
      $region31: #{conv_block_forward.2} parent=27 // pred_region
        %201 = vst [vmem:[%s193] sm:$0x1] 0.0
        %202 = vst [vmem:[%s196] sm:$0x1] 0.0
      $region32: #{conv_block_forward.2} parent=27 // pred_fallthru
        _
      %v203 = vld [vmem:[%s188] sm:$0xff]
      %v204 = vld [vmem:[%s188 + $0x8] sm:$0xff]
      %v205 = vld [vmem:[%s188 + $0x10] sm:$0xff]
      %v206 = vld [vmem:[%s188 + $0x18] sm:$0xff]
      %v207 = vld [vmem:[%s188 + $0x20] sm:$0xff]
      %v208 = vld [vmem:[%s188 + $0x28] sm:$0xff]
      %v209 = vld [vmem:[%s188 + $0x30] sm:$0xff]
      %v210 = vld [vmem:[%s188 + $0x38] sm:$0xff]
      %v211 = vld [vmem:[%s188 + $0x40] sm:$0xff]
      %v212 = vld [vmem:[%s188 + $0x48] sm:$0xff]
      %v213 = vld [vmem:[%s188 + $0x50] sm:$0xff]
      %v214 = vld [vmem:[%s188 + $0x58] sm:$0xff]
      %v215 = vld [vmem:[%s188 + $0x60] sm:$0xff]
      %v216 = vld [vmem:[%s188 + $0x68] sm:$0xff]
      %v217 = vld [vmem:[%s188 + $0x70] sm:$0xff]
      %v218 = vld [vmem:[%s188 + $0x78] sm:$0xff]
      %v219 = vld [vmem:[%s188 + $0x80] sm:$0xff]
      %v220 = vld [vmem:[%s188 + $0x88] sm:$0xff]
      %v221 = vld [vmem:[%s188 + $0x90] sm:$0xff]
      %v222 = vld [vmem:[%s188 + $0x98] sm:$0xff]
      %v223 = vld [vmem:[%s188 + $0xa0] sm:$0xff]
      %v224 = vld [vmem:[%s188 + $0xa8] sm:$0xff]
      %v225 = vld [vmem:[%s188 + $0xb0] sm:$0xff]
      %v226 = vld [vmem:[%s188 + $0xb8] sm:$0xff]
      %v227 = vld [vmem:[%s188 + $0xc0] sm:$0xff]
      %v228 = vld [vmem:[%s188 + $0xc8] sm:$0xff]
      %v229 = vld [vmem:[%s188 + $0xd0] sm:$0xff]
      %v230 = vld [vmem:[%s188 + $0xd8] sm:$0xff]
      %v231 = vld [vmem:[%s188 + $0xe0] sm:$0xff]
      %v232 = vld [vmem:[%s188 + $0xe8] sm:$0xff]
      %v233 = vld [vmem:[%s188 + $0xf0] sm:$0xff]
      %v234 = vld [vmem:[%s188 + $0xf8] sm:$0xff]
      %v235 = vld [vmem:[%s1] sm:$0xff]
      %v236 = vld [vmem:[%s1 + $0x8] sm:$0xff]
      %v237 = vld [vmem:[%s1 + $0x10] sm:$0xff]
      %v238 = vld [vmem:[%s1 + $0x18] sm:$0xff]
      %v239 = vld [vmem:[%s1 + $0x20] sm:$0xff]
      %vm240 = vcmask 326656
      %v242 = vsel %vm240, %v203, 0
      %v245 = vsel %vm240, %v204, 0
      %v248 = vsel %vm240, %v205, 0
      %v251 = vsel %vm240, %v206, 0
      %v254 = vsel %vm240, %v207, 0
      %v257 = vsel %vm240, %v208, 0
      %v260 = vsel %vm240, %v209, 0
      %v263 = vsel %vm240, %v210, 0
      %v266 = vsel %vm240, %v211, 0
      %v269 = vsel %vm240, %v212, 0
      %v272 = vsel %vm240, %v213, 0
      %v275 = vsel %vm240, %v214, 0
      %v278 = vsel %vm240, %v215, 0
      %v281 = vsel %vm240, %v216, 0
      %v284 = vsel %vm240, %v217, 0
      %v287 = vsel %vm240, %v218, 0
      %v290 = vsel %vm240, %v219, 0
      %v293 = vsel %vm240, %v220, 0
      %v296 = vsel %vm240, %v221, 0
      %v299 = vsel %vm240, %v222, 0
      %v302 = vsel %vm240, %v223, 0
      %v305 = vsel %vm240, %v224, 0
      %v308 = vsel %vm240, %v225, 0
      %v311 = vsel %vm240, %v226, 0
      %v314 = vsel %vm240, %v227, 0
      %v317 = vsel %vm240, %v228, 0
      %v320 = vsel %vm240, %v229, 0
      %v323 = vsel %vm240, %v230, 0
      %v326 = vsel %vm240, %v231, 0
      %v329 = vsel %vm240, %v232, 0
      %v332 = vsel %vm240, %v233, 0
      %v335 = vsel %vm240, %v234, 0
      %337 = vmatprep.subr.mxu0 0.0
      %338 = vmatpush1.msra.mxu0 %v235
      %339 = vmatprep.subr.mxu0 0.0
      %340 = vmatpush1.msra.mxu0 %v236
      %341 = vmatprep.subr.mxu0 0.0
      %342 = vmatpush1.msra.mxu0 %v237
      %343 = vmatprep.subr.mxu0 0.0
      %344 = vmatpush1.msra.mxu0 %v238
      %345 = vmatprep.subr.mxu0 0.0
      %346 = vmatpush1.msra.mxu0 %v239
      %347 = vmatprep.subr.mxu0 0.0
      %348 = vmatpush1.msra.mxu0 0.0
      %349 = vmatprep.subr.mxu0 0.0
      %350 = vmatpush1.msra.mxu0 0.0
      %351 = vmatprep.subr.mxu0 0.0
      %352 = vmatpush1.msra.mxu0 0.0
      %353 = vmatprep.subr.mxu0 0.0
      %354 = vmatpush1.msra.mxu0 0.0
      %355 = vmatprep.subr.mxu0 0.0
      %356 = vmatpush1.msra.mxu0 0.0
      %357 = vmatprep.subr.mxu0 0.0
      %358 = vmatpush1.msra.mxu0 0.0
      %359 = vmatprep.subr.mxu0 0.0
      %360 = vmatpush1.msra.mxu0 0.0
      %361 = vmatprep.subr.mxu0 0.0
      %362 = vmatpush1.msra.mxu0 0.0
      %363 = vmatprep.subr.mxu0 0.0
      %364 = vmatpush1.msra.mxu0 0.0
      %365 = vmatprep.subr.mxu0 0.0
      %366 = vmatpush1.msra.mxu0 0.0
      %367 = vmatprep.subr.mxu0 0.0
      %368 = vmatpush1.msra.mxu0 0.0
      %369 = vmatprep.subr.mxu0 0.0
      %370 = vmatpush1.msra.mxu0 0.0
      %371 = vmatprep.subr.mxu0 0.0
      %372 = vmatpush1.msra.mxu0 0.0
      %373 = vmatprep.subr.mxu0 0.0
      %374 = vmatpush1.msra.mxu0 0.0
      %375 = vmatprep.subr.mxu0 0.0
      %376 = vmatpush1.msra.mxu0 0.0
      %377 = vmatprep.subr.mxu0 0.0
      %378 = vmatpush1.msra.mxu0 0.0
      %379 = vmatprep.subr.mxu0 0.0
      %380 = vmatpush1.msra.mxu0 0.0
      %381 = vmatprep.subr.mxu0 0.0
      %382 = vmatpush1.msra.mxu0 0.0
      %383 = vmatprep.subr.mxu0 0.0
      %384 = vmatpush1.msra.mxu0 0.0
      %385 = vmatprep.subr.mxu0 0.0
      %386 = vmatpush1.msra.mxu0 0.0
      %387 = vmatprep.subr.mxu0 0.0
      %388 = vmatpush1.msra.mxu0 0.0
      %389 = vmatprep.subr.mxu0 0.0
      %390 = vmatpush1.msra.mxu0 0.0
      %391 = vmatprep.subr.mxu0 0.0
      %392 = vmatpush1.msra.mxu0 0.0
      %393 = vmatprep.subr.mxu0 0.0
      %394 = vmatpush1.msra.mxu0 0.0
      %395 = vmatprep.subr.mxu0 0.0
      %396 = vmatpush1.msra.mxu0 0.0
      %397 = vmatprep.subr.mxu0 0.0
      %398 = vmatpush1.msra.mxu0 0.0
      %399 = vmatprep.subr.mxu0 0.0
      %400 = vmatpush1.msra.mxu0 0.0
      %401 = vmatprep.mubr.f32.mxu0 0.0
      %402 = vmatmul.mubr.f32.gmra.mrb[0].mxu0 %v242
      %v403 = vpop.f32.mrb[0].mxu0
      %v404 = vadd.f32 0.0, %v403
      %v405 = vpop.f32.mrb[0].mxu0
      %406 = vmatprep.mubr.f32.mxu0 0.0
      %407 = vmatmul.mubr.f32.gmra.mrb[0].mxu0 %v245
      %v408 = vpop.f32.mrb[0].mxu0
      %v409 = vadd.f32 0.0, %v408
      %v410 = vpop.f32.mrb[0].mxu0
      %411 = vmatprep.mubr.f32.mxu0 0.0
      %412 = vmatmul.mubr.f32.gmra.mrb[0].mxu0 %v248
      %v413 = vpop.f32.mrb[0].mxu0
      %v414 = vadd.f32 0.0, %v413
      %v415 = vpop.f32.mrb[0].mxu0
      %416 = vmatprep.mubr.f32.mxu0 0.0
      %417 = vmatmul.mubr.f32.gmra.mrb[0].mxu0 %v251
      %v418 = vpop.f32.mrb[0].mxu0
      %v419 = vadd.f32 0.0, %v418
      %v420 = vpop.f32.mrb[0].mxu0
      %421 = vmatprep.mubr.f32.mxu0 0.0
      %422 = vmatmul.mubr.f32.gmra.mrb[0].mxu0 %v254
      %v423 = vpop.f32.mrb[0].mxu0
      %v424 = vadd.f32 0.0, %v423
      %v425 = vpop.f32.mrb[0].mxu0
      %426 = vmatprep.mubr.f32.mxu0 0.0
      %427 = vmatmul.mubr.f32.gmra.mrb[0].mxu0 %v257
      %v428 = vpop.f32.mrb[0].mxu0
      %v429 = vadd.f32 0.0, %v428
      %v430 = vpop.f32.mrb[0].mxu0
      %431 = vmatprep.mubr.f32.mxu0 0.0
      %432 = vmatmul.mubr.f32.gmra.mrb[0].mxu0 %v260
      %v433 = vpop.f32.mrb[0].mxu0
      %v434 = vadd.f32 0.0, %v433
      %v435 = vpop.f32.mrb[0].mxu0
      %436 = vmatprep.mubr.f32.mxu0 0.0
      %437 = vmatmul.mubr.f32.gmra.mrb[0].mxu0 %v263
      %v438 = vpop.f32.mrb[0].mxu0
      %v439 = vadd.f32 0.0, %v438
      %v440 = vpop.f32.mrb[0].mxu0
      %441 = vmatprep.mubr.f32.mxu0 0.0
      %442 = vmatmul.mubr.f32.gmra.mrb[0].mxu0 %v266
      %v443 = vpop.f32.mrb[0].mxu0
      %v444 = vadd.f32 0.0, %v443
      %v445 = vpop.f32.mrb[0].mxu0
      %446 = vmatprep.mubr.f32.mxu0 0.0
      %447 = vmatmul.mubr.f32.gmra.mrb[0].mxu0 %v269
      %v448 = vpop.f32.mrb[0].mxu0
      %v449 = vadd.f32 0.0, %v448
      %v450 = vpop.f32.mrb[0].mxu0
      %451 = vmatprep.mubr.f32.mxu0 0.0
      %452 = vmatmul.mubr.f32.gmra.mrb[0].mxu0 %v272
      %v453 = vpop.f32.mrb[0].mxu0
      %v454 = vadd.f32 0.0, %v453
      %v455 = vpop.f32.mrb[0].mxu0
      %456 = vmatprep.mubr.f32.mxu0 0.0
      %457 = vmatmul.mubr.f32.gmra.mrb[0].mxu0 %v275
      %v458 = vpop.f32.mrb[0].mxu0
      %v459 = vadd.f32 0.0, %v458
      %v460 = vpop.f32.mrb[0].mxu0
      %461 = vmatprep.mubr.f32.mxu0 0.0
      %462 = vmatmul.mubr.f32.gmra.mrb[0].mxu0 %v278
      %v463 = vpop.f32.mrb[0].mxu0
      %v464 = vadd.f32 0.0, %v463
      %v465 = vpop.f32.mrb[0].mxu0
      %466 = vmatprep.mubr.f32.mxu0 0.0
      %467 = vmatmul.mubr.f32.gmra.mrb[0].mxu0 %v281
      %v468 = vpop.f32.mrb[0].mxu0
      %v469 = vadd.f32 0.0, %v468
      %v470 = vpop.f32.mrb[0].mxu0
      %471 = vmatprep.mubr.f32.mxu0 0.0
      %472 = vmatmul.mubr.f32.gmra.mrb[0].mxu0 %v284
      %v473 = vpop.f32.mrb[0].mxu0
      %v474 = vadd.f32 0.0, %v473
      %v475 = vpop.f32.mrb[0].mxu0
      %476 = vmatprep.mubr.f32.mxu0 0.0
      %477 = vmatmul.mubr.f32.gmra.mrb[0].mxu0 %v287
      %v478 = vpop.f32.mrb[0].mxu0
      %v479 = vadd.f32 0.0, %v478
      %v480 = vpop.f32.mrb[0].mxu0
      %481 = vmatprep.mubr.f32.mxu0 0.0
      %482 = vmatmul.mubr.f32.gmra.mrb[0].mxu0 %v290
      %v483 = vpop.f32.mrb[0].mxu0
      %v484 = vadd.f32 0.0, %v483
      %v485 = vpop.f32.mrb[0].mxu0
      %486 = vmatprep.mubr.f32.mxu0 0.0
      %487 = vmatmul.mubr.f32.gmra.mrb[0].mxu0 %v293
      %v488 = vpop.f32.mrb[0].mxu0
      %v489 = vadd.f32 0.0, %v488
      %v490 = vpop.f32.mrb[0].mxu0
      %491 = vmatprep.mubr.f32.mxu0 0.0
      %492 = vmatmul.mubr.f32.gmra.mrb[0].mxu0 %v296
      %v493 = vpop.f32.mrb[0].mxu0
      %v494 = vadd.f32 0.0, %v493
      %v495 = vpop.f32.mrb[0].mxu0
      %496 = vmatprep.mubr.f32.mxu0 0.0
      %497 = vmatmul.mubr.f32.gmra.mrb[0].mxu0 %v299
      %v498 = vpop.f32.mrb[0].mxu0
      %v499 = vadd.f32 0.0, %v498
      %v500 = vpop.f32.mrb[0].mxu0
      %501 = vmatprep.mubr.f32.mxu0 0.0
      %502 = vmatmul.mubr.f32.gmra.mrb[0].mxu0 %v302
      %v503 = vpop.f32.mrb[0].mxu0
      %v504 = vadd.f32 0.0, %v503
      %v505 = vpop.f32.mrb[0].mxu0
      %506 = vmatprep.mubr.f32.mxu0 0.0
      %507 = vmatmul.mubr.f32.gmra.mrb[0].mxu0 %v305
      %v508 = vpop.f32.mrb[0].mxu0
      %v509 = vadd.f32 0.0, %v508
      %v510 = vpop.f32.mrb[0].mxu0
      %511 = vmatprep.mubr.f32.mxu0 0.0
      %512 = vmatmul.mubr.f32.gmra.mrb[0].mxu0 %v308
      %v513 = vpop.f32.mrb[0].mxu0
      %v514 = vadd.f32 0.0, %v513
      %v515 = vpop.f32.mrb[0].mxu0
      %516 = vmatprep.mubr.f32.mxu0 0.0
      %517 = vmatmul.mubr.f32.gmra.mrb[0].mxu0 %v311
      %v518 = vpop.f32.mrb[0].mxu0
      %v519 = vadd.f32 0.0, %v518
      %v520 = vpop.f32.mrb[0].mxu0
      %521 = vmatprep.mubr.f32.mxu0 0.0
      %522 = vmatmul.mubr.f32.gmra.mrb[0].mxu0 %v314
      %v523 = vpop.f32.mrb[0].mxu0
      %v524 = vadd.f32 0.0, %v523
      %v525 = vpop.f32.mrb[0].mxu0
      %526 = vmatprep.mubr.f32.mxu0 0.0
      %527 = vmatmul.mubr.f32.gmra.mrb[0].mxu0 %v317
      %v528 = vpop.f32.mrb[0].mxu0
      %v529 = vadd.f32 0.0, %v528
      %v530 = vpop.f32.mrb[0].mxu0
      %531 = vmatprep.mubr.f32.mxu0 0.0
      %532 = vmatmul.mubr.f32.gmra.mrb[0].mxu0 %v320
      %v533 = vpop.f32.mrb[0].mxu0
      %v534 = vadd.f32 0.0, %v533
      %v535 = vpop.f32.mrb[0].mxu0
      %536 = vmatprep.mubr.f32.mxu0 0.0
      %537 = vmatmul.mubr.f32.gmra.mrb[0].mxu0 %v323
      %v538 = vpop.f32.mrb[0].mxu0
      %v539 = vadd.f32 0.0, %v538
      %v540 = vpop.f32.mrb[0].mxu0
      %541 = vmatprep.mubr.f32.mxu0 0.0
      %542 = vmatmul.mubr.f32.gmra.mrb[0].mxu0 %v326
      %v543 = vpop.f32.mrb[0].mxu0
      %v544 = vadd.f32 0.0, %v543
      %v545 = vpop.f32.mrb[0].mxu0
      %546 = vmatprep.mubr.f32.mxu0 0.0
      %547 = vmatmul.mubr.f32.gmra.mrb[0].mxu0 %v329
      %v548 = vpop.f32.mrb[0].mxu0
      %v549 = vadd.f32 0.0, %v548
      %v550 = vpop.f32.mrb[0].mxu0
      %551 = vmatprep.mubr.f32.mxu0 0.0
      %552 = vmatmul.mubr.f32.gmra.mrb[0].mxu0 %v332
      %v553 = vpop.f32.mrb[0].mxu0
      %v554 = vadd.f32 0.0, %v553
      %v555 = vpop.f32.mrb[0].mxu0
      %556 = vmatprep.mubr.f32.mxu0 0.0
      %557 = vmatmul.mubr.f32.gmra.mrb[0].mxu0 %v335
      %v558 = vpop.f32.mrb[0].mxu0
      %v559 = vadd.f32 0.0, %v558
      %v560 = vpop.f32.mrb[0].mxu0
      %561 = vdwg.mxu0
      %v562 = vld [vmem:[%s193] sm:$0x1]
      %v563 = vadd.f32 %v404, %v409
      %v564 = vadd.f32 %v563, %v414
      %v565 = vadd.f32 %v564, %v419
      %v566 = vadd.f32 %v565, %v424
      %v567 = vadd.f32 %v566, %v429
      %v568 = vadd.f32 %v567, %v434
      %v569 = vadd.f32 %v568, %v439
      %v570 = vadd.f32 %v569, %v444
      %v571 = vadd.f32 %v570, %v449
      %v572 = vadd.f32 %v571, %v454
      %v573 = vadd.f32 %v572, %v459
      %v574 = vadd.f32 %v573, %v464
      %v575 = vadd.f32 %v574, %v469
      %v576 = vadd.f32 %v575, %v474
      %v577 = vadd.f32 %v576, %v479
      %v578 = vadd.f32 %v577, %v484
      %v579 = vadd.f32 %v578, %v489
      %v580 = vadd.f32 %v579, %v494
      %v581 = vadd.f32 %v580, %v499
      %v582 = vadd.f32 %v581, %v504
      %v583 = vadd.f32 %v582, %v509
      %v584 = vadd.f32 %v583, %v514
      %v585 = vadd.f32 %v584, %v519
      %v586 = vadd.f32 %v585, %v524
      %v587 = vadd.f32 %v586, %v529
      %v588 = vadd.f32 %v587, %v534
      %v589 = vadd.f32 %v588, %v539
      %v590 = vadd.f32 %v589, %v544
      %v591 = vadd.f32 %v590, %v549
      %v592 = vadd.f32 %v591, %v554
      %v593 = vadd.f32 %v592, %v559
      %v594 = vrot.slane %v593, 4
      %v595 = vadd.f32 %v593, %v594
      %v596 = vrot.slane %v595, 2
      %v597 = vadd.f32 %v595, %v596
      %v598 = vrot.slane %v597, 1
      %v599 = vadd.f32 %v597, %v598
      %v600 = vadd.f32 %v562, %v599
      %601 = vst [vmem:[%s193] sm:$0x1] %v600
      %v602 = vld [vmem:[%s196] sm:$0x1]
      %v603 = vmul.f32 %v404, %v404
      %v604 = vmul.f32 %v409, %v409
      %v605 = vmul.f32 %v414, %v414
      %v606 = vmul.f32 %v419, %v419
      %v607 = vmul.f32 %v424, %v424
      %v608 = vmul.f32 %v429, %v429
      %v609 = vmul.f32 %v434, %v434
      %v610 = vmul.f32 %v439, %v439
      %v611 = vmul.f32 %v444, %v444
      %v612 = vmul.f32 %v449, %v449
      %v613 = vmul.f32 %v454, %v454
      %v614 = vmul.f32 %v459, %v459
      %v615 = vmul.f32 %v464, %v464
      %v616 = vmul.f32 %v469, %v469
      %v617 = vmul.f32 %v474, %v474
      %v618 = vmul.f32 %v479, %v479
      %v619 = vmul.f32 %v484, %v484
      %v620 = vmul.f32 %v489, %v489
      %v621 = vmul.f32 %v494, %v494
      %v622 = vmul.f32 %v499, %v499
      %v623 = vmul.f32 %v504, %v504
      %v624 = vmul.f32 %v509, %v509
      %v625 = vmul.f32 %v514, %v514
      %v626 = vmul.f32 %v519, %v519
      %v627 = vmul.f32 %v524, %v524
      %v628 = vmul.f32 %v529, %v529
      %v629 = vmul.f32 %v534, %v534
      %v630 = vmul.f32 %v539, %v539
      %v631 = vmul.f32 %v544, %v544
      %v632 = vmul.f32 %v549, %v549
      %v633 = vmul.f32 %v554, %v554
      %v634 = vmul.f32 %v559, %v559
      %v635 = vadd.f32 %v603, %v604
      %v636 = vadd.f32 %v635, %v605
      %v637 = vadd.f32 %v636, %v606
      %v638 = vadd.f32 %v637, %v607
      %v639 = vadd.f32 %v638, %v608
      %v640 = vadd.f32 %v639, %v609
      %v641 = vadd.f32 %v640, %v610
      %v642 = vadd.f32 %v641, %v611
      %v643 = vadd.f32 %v642, %v612
      %v644 = vadd.f32 %v643, %v613
      %v645 = vadd.f32 %v644, %v614
      %v646 = vadd.f32 %v645, %v615
      %v647 = vadd.f32 %v646, %v616
      %v648 = vadd.f32 %v647, %v617
      %v649 = vadd.f32 %v648, %v618
      %v650 = vadd.f32 %v649, %v619
      %v651 = vadd.f32 %v650, %v620
      %v652 = vadd.f32 %v651, %v621
      %v653 = vadd.f32 %v652, %v622
      %v654 = vadd.f32 %v653, %v623
      %v655 = vadd.f32 %v654, %v624
      %v656 = vadd.f32 %v655, %v625
      %v657 = vadd.f32 %v656, %v626
      %v658 = vadd.f32 %v657, %v627
      %v659 = vadd.f32 %v658, %v628
      %v660 = vadd.f32 %v659, %v629
      %v661 = vadd.f32 %v660, %v630
      %v662 = vadd.f32 %v661, %v631
      %v663 = vadd.f32 %v662, %v632
      %v664 = vadd.f32 %v663, %v633
      %v665 = vadd.f32 %v664, %v634
      %v666 = vrot.slane %v665, 4
      %v667 = vadd.f32 %v665, %v666
      %v668 = vrot.slane %v667, 2
      %v669 = vadd.f32 %v667, %v668
      %v670 = vrot.slane %v669, 1
      %v671 = vadd.f32 %v669, %v670
      %v672 = vadd.f32 %v602, %v671
      %673 = vst [vmem:[%s196] sm:$0x1] %v672
      %p674 = scmp.lt.s32.totalorder %s19, 1
      %s675 = scalar_select %p674, %s19, 1
      %s676 = scalar_lea.vmem %s2, %s675
      %p677 = scmp.lt.s32.totalorder %s19, 1
      %s678 = scalar_select %p677, %s19, 1
      %s679 = scalar_lea.vmem %s3, %s678
      // Predicated region
      $region33: #{conv_block_forward.2} parent=27 // pred_check
        %p680 = pneg %p94
      $region34: #{conv_block_forward.2} parent=27 // pred_check_branch
        %682 = sbr.rel (%p680) target = $region36
      $region35: #{conv_block_forward.2} parent=27 // pred_region
        _
      $region36: #{conv_block_forward.2} parent=27 // pred_fallthru
        _
      // Predicated region
      $region37: #{conv_block_forward.2} parent=27 // pred_check
        %p683 = pneg %p120
      $region38: #{conv_block_forward.2} parent=27 // pred_check_branch
        %685 = sbr.rel (%p683) target = $region40
      $region39: #{conv_block_forward.2} parent=27 // pred_region
        _
      $region40: #{conv_block_forward.2} parent=27 // pred_fallthru
        _
    $region28: #{conv_block_forward.2} parent=5 // pred_fallthru
      _
    %p686 = scmp.le.s32.totalorder 2, %s10
    // Predicated region
    $region41: #{conv_block_forward.2} parent=5 // pred_check
      %p687 = pneg %p686
    $region42: #{conv_block_forward.2} parent=5 // pred_check_branch
      %689 = sbr.rel (%p687) target = $region44
    $region43: #{conv_block_forward.2} parent=5 // pred_region
      %s690 = ssub.s32 %s10, 2
      // Predicated region
      $region45: #{conv_block_forward.2} parent=43 // pred_check
        %p691 = pneg %p100
      $region46: #{conv_block_forward.2} parent=43 // pred_check_branch
        %693 = sbr.rel (%p691) target = $region48
      $region47: #{conv_block_forward.2} parent=43 // pred_region
        %p694 = scmp.lt.s32.totalorder %s21, 1
        %s695 = scalar_select %p694, %s21, 1
        %s696 = scalar_lea.vmem %s2, %s695
      $region48: #{conv_block_forward.2} parent=43 // pred_fallthru
        _
      // Predicated region
      $region49: #{conv_block_forward.2} parent=43 // pred_check
        %p697 = pneg %p126
      $region50: #{conv_block_forward.2} parent=43 // pred_check_branch
        %699 = sbr.rel (%p697) target = $region52
      $region51: #{conv_block_forward.2} parent=43 // pred_region
        %p700 = scmp.lt.s32.totalorder %s21, 1
        %s701 = scalar_select %p700, %s21, 1
        %s702 = scalar_lea.vmem %s3, %s701
      $region52: #{conv_block_forward.2} parent=43 // pred_fallthru
        _
    $region44: #{conv_block_forward.2} parent=5 // pred_fallthru
      _
  $region6: #{conv_block_forward.2} parent=0 // loop_footer
    %s14 = sadd.s32 1, %s10
  $region7: #{conv_block_forward.2} parent=0 // loop_footer_branch
    %9 = sbr.rel target = $region3
  $region8: #{conv_block_forward.2} parent=0 // loop_exit
    _

</llo_original>
